<compile_context>
chip_gen: v7x
topology: tpu7x:2x2x1
jax: 0.10.0
libtpu: 0.0.40
codegen_flags: <defaults>
</compile_context>

<pallas_src>
import functools

import jax
import jax.numpy as jnp
from jax.experimental import pallas as pl
from jax.experimental.pallas import tpu as pltpu


# ----------------------------------------------------------------------------
# helpers (value-level, used inside kernels)
# ----------------------------------------------------------------------------
def _layer_norm(a, g, b, eps=1e-5):
    mu = jnp.mean(a, axis=-1, keepdims=True)
    var = jnp.mean((a - mu) ** 2, axis=-1, keepdims=True)
    return (a - mu) * jax.lax.rsqrt(var + eps) * g + b


def _mm(a_f32, w_bf16, b_f32):
    return jnp.dot(a_f32.astype(jnp.bfloat16), w_bf16,
                   preferred_element_type=jnp.float32) + b_f32


# ----------------------------------------------------------------------------
# fused encoder-stack kernel: grid over layers, activation resident in VMEM
# ----------------------------------------------------------------------------
def encoder_stack_kernel(x_ref, vl_ref,
                         wqkv_ref, bqkv_ref, wo_ref, bo_ref,
                         g1_ref, be1_ref,
                         w1_ref, b1_ref, w2_ref, b2_ref,
                         g2_ref, be2_ref,
                         out_ref, x_sc,
                         *, num_heads, batch, seq):
    l = pl.program_id(0)
    n_layers = pl.num_programs(0)

    @pl.when(l == 0)
    def _():
        x_sc[...] = x_ref[...]                      # load activation once

    x = x_sc[...]                                   # (B*S, H) f32, resident
    BS, H = x.shape
    d = H // num_heads
    scale = 1.0 / (d ** 0.5)

    wqkv = wqkv_ref[0]                              # (H, 3H) bf16
    bqkv = bqkv_ref[0]                              # (1, 3H) f32
    wo, bo = wo_ref[0], bo_ref[0]
    g1, be1 = g1_ref[0], be1_ref[0]
    w1, b1 = w1_ref[0], b1_ref[0]
    w2, b2 = w2_ref[0], b2_ref[0]
    g2, be2 = g2_ref[0], be2_ref[0]

    # ---- fused QKV projection: one MXU pass with N = 3H ----
    qkv = _mm(x, wqkv, bqkv)                        # (B*S, 3H) f32
    q = qkv[:, :H].reshape(batch, seq, H)
    k = qkv[:, H:2 * H].reshape(batch, seq, H)
    v = qkv[:, 2 * H:].reshape(batch, seq, H)

    # ---- additive key mask, built once per layer (d2l masked_softmax) ----
    key_ids = jax.lax.broadcasted_iota(jnp.int32, (batch, 1, seq), 2)
    amask = jnp.where(key_ids < vl_ref[...], 0.0, -1e6)     # (B, 1, S)

    # ---- attention: batched einsums over batch, static loop over heads;
    #      output projection accumulated per head (no concatenate) ----
    attn = jnp.zeros((BS, H), jnp.float32)
    for h in range(num_heads):
        sl = slice(h * d, (h + 1) * d)
        qh = q[:, :, sl].astype(jnp.bfloat16)
        kh = k[:, :, sl].astype(jnp.bfloat16)
        vh = v[:, :, sl].astype(jnp.bfloat16)
        s = jnp.einsum('bqd,bkd->bqk', qh, kh,
                       preferred_element_type=jnp.float32) * scale
        s = s + amask
        m = jnp.max(s, axis=-1, keepdims=True)
        e = jnp.exp(s - m)
        p = e * pl.reciprocal(jnp.sum(e, axis=-1, keepdims=True), approx=True)
        oh = jnp.einsum('bqk,bkd->bqd', p.astype(jnp.bfloat16), vh,
                        preferred_element_type=jnp.float32)  # (B, S, d)
        attn = attn + jnp.dot(oh.reshape(BS, d).astype(jnp.bfloat16),
                              wo[sl, :], preferred_element_type=jnp.float32)
    attn = attn + bo

    # ---- AddNorm 1, FFN, AddNorm 2 ----
    h1 = _layer_norm(x + attn, g1, be1)
    f = _mm(jnp.maximum(_mm(h1, w1, b1), 0.0), w2, b2)
    x_new = _layer_norm(h1 + f, g2, be2)

    x_sc[...] = x_new                               # stays in VMEM for layer l+1

    @pl.when(l == n_layers - 1)
    def _():
        out_ref[...] = x_new                        # single HBM writeback


def mlm_kernel(x_ref, w1_ref, b1_ref, g_ref, be_ref, w2_ref, b2_ref, out_ref):
    h = jnp.maximum(_mm(x_ref[...], w1_ref[...], b1_ref[...]), 0.0)
    h = _layer_norm(h, g_ref[...], be_ref[...])
    out_ref[...] = _mm(h, w2_ref[...], b2_ref[...])
    # TODO(synk): at real vocab sizes (~30k) w2 must be tiled over the vocab
    # axis with a grid instead of a full-VMEM spec.


def head_kernel(x_ref, wh_ref, bh_ref, wn_ref, bn_ref, out_ref):
    h = jnp.tanh(_mm(x_ref[...], wh_ref[...], bh_ref[...]))   # hidden: Linear+Tanh
    out_ref[...] = _mm(h, wn_ref[...], bn_ref[...])           # nsp, lane-padded to 128


# ----------------------------------------------------------------------------
# wrappers
# ----------------------------------------------------------------------------
def bert_encoder_stack(x, valid_lens, lp, num_heads):
    B, S, H = x.shape
    L = lp["wqkv"].shape[0]
    F = lp["w1"].shape[2]
    x2 = x.reshape(B * S, H).astype(jnp.float32)
    vl3 = valid_lens.reshape(B, 1, 1).astype(jnp.int32)

    def inv(shape):                       # layer-invariant input (fetched once)
        return pl.BlockSpec(shape, lambda l: (0,) * len(shape))

    def per_layer(shape):                 # stacked (L, ...) -> pick layer l
        return pl.BlockSpec((1,) + shape[1:],
                            lambda l: (l,) + (0,) * (len(shape) - 1))

    in_specs = [
        inv((B * S, H)),                          # x
        inv((B, 1, 1)),                           # valid_lens
        per_layer((L, H, 3 * H)), per_layer((L, 1, 3 * H)),   # wqkv, bqkv
        per_layer((L, H, H)),     per_layer((L, 1, H)),       # wo, bo
        per_layer((L, 1, H)),     per_layer((L, 1, H)),       # ln1 gamma, beta
        per_layer((L, H, F)),     per_layer((L, 1, F)),       # ffn w1, b1
        per_layer((L, F, H)),     per_layer((L, 1, H)),       # ffn w2, b2
        per_layer((L, 1, H)),     per_layer((L, 1, H)),       # ln2 gamma, beta
    ]
    out = pl.pallas_call(
        functools.partial(encoder_stack_kernel, num_heads=num_heads,
                          batch=B, seq=S),
        out_shape=jax.ShapeDtypeStruct((B * S, H), jnp.float32),
        grid=(L,),
        in_specs=in_specs,
        out_specs=pl.BlockSpec((B * S, H), lambda l: (0, 0)),
        scratch_shapes=[pltpu.VMEM((B * S, H), jnp.float32)],
        compiler_params=pltpu.CompilerParams(
            dimension_semantics=("arbitrary",),
            vmem_limit_bytes=32 * 1024 * 1024),
    )(x2, vl3, lp["wqkv"], lp["bqkv"], lp["wo"], lp["bo"],
      lp["g1"], lp["be1"], lp["w1"], lp["b1"], lp["w2"], lp["b2"],
      lp["g2"], lp["be2"])
    return out.reshape(B, S, H)


def mlm_head(x_flat, p):
    n, _ = x_flat.shape
    V = p["w2"].shape[1]
    vmem = pl.BlockSpec(memory_space=pltpu.MemorySpace.VMEM)
    return pl.pallas_call(
        mlm_kernel,
        out_shape=jax.ShapeDtypeStruct((n, V), jnp.float32),
        in_specs=[vmem] * 7,
        out_specs=vmem,
    )(x_flat, p["w1"], p["b1"], p["g"], p["be"], p["w2"], p["b2"])


def nsp_head(cls_x, p_hidden, p_nsp):
    B, _ = cls_x.shape
    NP = p_nsp["w"].shape[1]              # lane-padded width (128)
    vmem = pl.BlockSpec(memory_space=pltpu.MemorySpace.VMEM)
    return pl.pallas_call(
        head_kernel,
        out_shape=jax.ShapeDtypeStruct((B, NP), jnp.float32),
        in_specs=[vmem] * 5,
        out_specs=vmem,
    )(cls_x, p_hidden["w"], p_hidden["b"], p_nsp["w"], p_nsp["b"])


# ----------------------------------------------------------------------------
# parameters (deterministic synthetic init)
# ----------------------------------------------------------------------------
def init_params(key, vocab_size, H, F, num_heads, num_layers, max_len):
    keys = iter(jax.random.split(key, 64))

    def nrm(shape, scale=0.02, dtype=jnp.bfloat16):
        return (jax.random.normal(next(keys), shape, jnp.float32)
                * scale).astype(dtype)

    def zeros(shape):
        return jnp.zeros(shape, jnp.float32)

    def ones(shape):
        return jnp.ones(shape, jnp.float32)

    L = num_layers
    layers = dict(
        wqkv=jnp.stack([nrm((H, 3 * H)) for _ in range(L)]),
        bqkv=jnp.stack([zeros((1, 3 * H)) for _ in range(L)]),
        wo=jnp.stack([nrm((H, H)) for _ in range(L)]),
        bo=jnp.stack([zeros((1, H)) for _ in range(L)]),
        g1=jnp.stack([ones((1, H)) for _ in range(L)]),
        be1=jnp.stack([zeros((1, H)) for _ in range(L)]),
        w1=jnp.stack([nrm((H, F)) for _ in range(L)]),
        b1=jnp.stack([zeros((1, F)) for _ in range(L)]),
        w2=jnp.stack([nrm((F, H)) for _ in range(L)]),
        b2=jnp.stack([zeros((1, H)) for _ in range(L)]),
        g2=jnp.stack([ones((1, H)) for _ in range(L)]),
        be2=jnp.stack([zeros((1, H)) for _ in range(L)]),
    )

    # NSP weights padded to 128 output lanes (real width = 2, sliced outside).
    wn_raw = jax.random.normal(next(keys), (H, 2), jnp.float32) * 0.02
    wn = jnp.zeros((H, 128), jnp.float32).at[:, :2].set(wn_raw).astype(jnp.bfloat16)

    params = dict(
        num_heads=num_heads,
        tok_emb=nrm((vocab_size, H), 1.0, jnp.float32),
        seg_emb=nrm((2, H), 1.0, jnp.float32),
        pos_emb=nrm((1, max_len, H), 1.0, jnp.float32),
        layers=layers,
        mlm=dict(w1=nrm((H, H)), b1=zeros((1, H)),
                 g=ones((1, H)), be=zeros((1, H)),
                 w2=nrm((H, vocab_size)), b2=zeros((1, vocab_size))),
        hidden=dict(w=nrm((H, H)), b=zeros((1, H))),
        nsp=dict(w=wn, b=zeros((1, 128))),
    )
    return params


# ----------------------------------------------------------------------------
# full BertModel forward
# ----------------------------------------------------------------------------
def bert_forward(params, tokens, segments, valid_lens=None, pred_positions=None):
    B, S = tokens.shape
    H = params["tok_emb"].shape[1]
    if valid_lens is None:
        valid_lens = jnp.full((B,), S, dtype=jnp.int32)

    # Embedding lookups are gathers -> plain JAX glue (no sqrt(H) scaling in
    # d2l's BertEncoder).
    x = params["tok_emb"][tokens] + params["seg_emb"][segments]
    x = (x + params["pos_emb"][:, :S, :]).astype(jnp.float32)

    encoded_x = bert_encoder_stack(x, valid_lens, params["layers"],
                                   params["num_heads"])

    if pred_positions is not None:
        _, P = pred_positions.shape
        masked = encoded_x[jnp.arange(B)[:, None], pred_positions]  # (B, P, H)
        mlm_y_hat = mlm_head(masked.reshape(B * P, H), params["mlm"])
        mlm_y_hat = mlm_y_hat.reshape(B, P, -1)
    else:
        mlm_y_hat = None

    cls = encoded_x[:, 0, :]                                        # (B, H)
    nsp_y_hat = nsp_head(cls, params["hidden"], params["nsp"])[:, :2]
    return encoded_x, mlm_y_hat, nsp_y_hat


# ----------------------------------------------------------------------------
if __name__ == "__main__":
    vocab_size = 128
    num_hiddens = 32          # hidden dim H
    ffn_num_hiddens = 64
    num_heads = 2
    num_layers = 2
    max_len = 64
    B, S, P = 2, 8, 3

    params = init_params(jax.random.PRNGKey(0), vocab_size, num_hiddens,
                         ffn_num_hiddens, num_heads, num_layers, max_len)

    k1, k2 = jax.random.split(jax.random.PRNGKey(0))
    tokens = jax.random.randint(k1, (B, S), 0, vocab_size, dtype=jnp.int32)
    segments = jnp.concatenate(
        [jnp.zeros((B, S // 2), jnp.int32), jnp.ones((B, S // 2), jnp.int32)],
        axis=1)
    valid_lens = jnp.array([S, S - 2], dtype=jnp.int32)
    pred_positions = jnp.array([[1, 3, 5], [0, 2, 6]], dtype=jnp.int32)

    encoded_x, mlm_y_hat, nsp_y_hat = bert_forward(
        params, tokens, segments, valid_lens, pred_positions)
    jax.block_until_ready((encoded_x, mlm_y_hat, nsp_y_hat))

    assert encoded_x.shape == (B, S, num_hiddens)
    assert mlm_y_hat.shape == (B, P, vocab_size)
    assert nsp_y_hat.shape == (B, 2)
    print("KERNEL_OK")
</pallas_src>

<mosaic_0001>
module attributes {stable_mosaic.version = 11 : i64} {
  func.func @encoder_stack_kernel(%arg0: i32, %arg1: memref<16x32xf32, #tpu.memory_space<vmem>>, %arg2: memref<2x1x1xi32, #tpu.memory_space<vmem>>, %arg3: memref<1x32x96xbf16, #tpu.memory_space<vmem>>, %arg4: memref<1x1x96xf32, #tpu.memory_space<vmem>>, %arg5: memref<1x32x32xbf16, #tpu.memory_space<vmem>>, %arg6: memref<1x1x32xf32, #tpu.memory_space<vmem>>, %arg7: memref<1x1x32xf32, #tpu.memory_space<vmem>>, %arg8: memref<1x1x32xf32, #tpu.memory_space<vmem>>, %arg9: memref<1x32x64xbf16, #tpu.memory_space<vmem>>, %arg10: memref<1x1x64xf32, #tpu.memory_space<vmem>>, %arg11: memref<1x64x32xbf16, #tpu.memory_space<vmem>>, %arg12: memref<1x1x32xf32, #tpu.memory_space<vmem>>, %arg13: memref<1x1x32xf32, #tpu.memory_space<vmem>>, %arg14: memref<1x1x32xf32, #tpu.memory_space<vmem>>, %arg15: memref<16x32xf32, #tpu.memory_space<vmem>>, %arg16: memref<16x32xf32, #tpu.memory_space<vmem>>) attributes {dimension_semantics = [#tpu.dimension_semantics<arbitrary>], iteration_bounds = array<i64: 2>, scalar_prefetch = 0 : i64, scratch_operands = 1 : i64, tpu.core_type = #tpu.core_type<tc>, window_params = [{pipeline_mode = #tpu.pipeline_mode<synchronous>, transform_indices = @transform_0, window_bounds = array<i64: 16, 32>}, {pipeline_mode = #tpu.pipeline_mode<synchronous>, transform_indices = @transform_1, window_bounds = array<i64: 2, 1, 1>}, {transform_indices = @transform_2, window_bounds = array<i64: 1, 32, 96>}, {transform_indices = @transform_3, window_bounds = array<i64: 1, 1, 96>}, {transform_indices = @transform_4, window_bounds = array<i64: 1, 32, 32>}, {transform_indices = @transform_5, window_bounds = array<i64: 1, 1, 32>}, {transform_indices = @transform_6, window_bounds = array<i64: 1, 1, 32>}, {transform_indices = @transform_7, window_bounds = array<i64: 1, 1, 32>}, {transform_indices = @transform_8, window_bounds = array<i64: 1, 32, 64>}, {transform_indices = @transform_9, window_bounds = array<i64: 1, 1, 64>}, {transform_indices = @transform_10, window_bounds = array<i64: 1, 64, 32>}, {transform_indices = @transform_11, window_bounds = array<i64: 1, 1, 32>}, {transform_indices = @transform_12, window_bounds = array<i64: 1, 1, 32>}, {transform_indices = @transform_13, window_bounds = array<i64: 1, 1, 32>}, {pipeline_mode = #tpu.pipeline_mode<synchronous>, transform_indices = @transform_14, window_bounds = array<i64: 16, 32>}]} {
    %c0_i32 = arith.constant 0 : i32
    %0 = arith.cmpi eq, %arg0, %c0_i32 : i32
    %1 = arith.extui %0 : i1 to i32
    %c0_i32_0 = arith.constant 0 : i32
    %2 = arith.cmpi ne, %1, %c0_i32_0 : i32
    scf.if %2 {
      %c0_72 = arith.constant 0 : index
      %c0_73 = arith.constant 0 : index
      %164 = vector.load %arg1[%c0_72, %c0_73] : memref<16x32xf32, #tpu.memory_space<vmem>>, vector<16x32xf32>
      %c0_74 = arith.constant 0 : index
      %c0_75 = arith.constant 0 : index
      %165 = vector.load %arg16[%c0_74, %c0_75] : memref<16x32xf32, #tpu.memory_space<vmem>>, vector<16x32xf32>
      tpu.vector_store %arg16[%c0_74, %c0_75], %164 {strides = array<i32>} : memref<16x32xf32, #tpu.memory_space<vmem>>, vector<16x32xf32>,
    } else {
    }
    %c0 = arith.constant 0 : index
    %c0_1 = arith.constant 0 : index
    %3 = vector.load %arg16[%c0, %c0_1] : memref<16x32xf32, #tpu.memory_space<vmem>>, vector<16x32xf32>
    %c0_2 = arith.constant 0 : index
    %c0_3 = arith.constant 0 : index
    %c0_4 = arith.constant 0 : index
    %4 = vector.load %arg3[%c0_2, %c0_3, %c0_4] : memref<1x32x96xbf16, #tpu.memory_space<vmem>>, vector<1x32x96xbf16>
    %5 = vector.shape_cast %4 : vector<1x32x96xbf16> to vector<32x96xbf16>
    %c0_5 = arith.constant 0 : index
    %c0_6 = arith.constant 0 : index
    %c0_7 = arith.constant 0 : index
    %6 = vector.load %arg4[%c0_5, %c0_6, %c0_7] : memref<1x1x96xf32, #tpu.memory_space<vmem>>, vector<1x1x96xf32>
    %7 = vector.shape_cast %6 : vector<1x1x96xf32> to vector<1x96xf32>
    %c0_8 = arith.constant 0 : index
    %c0_9 = arith.constant 0 : index
    %c0_10 = arith.constant 0 : index
    %8 = vector.load %arg5[%c0_8, %c0_9, %c0_10] : memref<1x32x32xbf16, #tpu.memory_space<vmem>>, vector<1x32x32xbf16>
    %9 = vector.shape_cast %8 : vector<1x32x32xbf16> to vector<32x32xbf16>
    %c0_11 = arith.constant 0 : index
    %c0_12 = arith.constant 0 : index
    %c0_13 = arith.constant 0 : index
    %10 = vector.load %arg6[%c0_11, %c0_12, %c0_13] : memref<1x1x32xf32, #tpu.memory_space<vmem>>, vector<1x1x32xf32>
    %11 = vector.shape_cast %10 : vector<1x1x32xf32> to vector<1x32xf32>
    %c0_14 = arith.constant 0 : index
    %c0_15 = arith.constant 0 : index
    %c0_16 = arith.constant 0 : index
    %12 = vector.load %arg7[%c0_14, %c0_15, %c0_16] : memref<1x1x32xf32, #tpu.memory_space<vmem>>, vector<1x1x32xf32>
    %13 = vector.shape_cast %12 : vector<1x1x32xf32> to vector<1x32xf32>
    %c0_17 = arith.constant 0 : index
    %c0_18 = arith.constant 0 : index
    %c0_19 = arith.constant 0 : index
    %14 = vector.load %arg8[%c0_17, %c0_18, %c0_19] : memref<1x1x32xf32, #tpu.memory_space<vmem>>, vector<1x1x32xf32>
    %15 = vector.shape_cast %14 : vector<1x1x32xf32> to vector<1x32xf32>
    %c0_20 = arith.constant 0 : index
    %c0_21 = arith.constant 0 : index
    %c0_22 = arith.constant 0 : index
    %16 = vector.load %arg9[%c0_20, %c0_21, %c0_22] : memref<1x32x64xbf16, #tpu.memory_space<vmem>>, vector<1x32x64xbf16>
    %17 = vector.shape_cast %16 : vector<1x32x64xbf16> to vector<32x64xbf16>
    %c0_23 = arith.constant 0 : index
    %c0_24 = arith.constant 0 : index
    %c0_25 = arith.constant 0 : index
    %18 = vector.load %arg10[%c0_23, %c0_24, %c0_25] : memref<1x1x64xf32, #tpu.memory_space<vmem>>, vector<1x1x64xf32>
    %19 = vector.shape_cast %18 : vector<1x1x64xf32> to vector<1x64xf32>
    %c0_26 = arith.constant 0 : index
    %c0_27 = arith.constant 0 : index
    %c0_28 = arith.constant 0 : index
    %20 = vector.load %arg11[%c0_26, %c0_27, %c0_28] : memref<1x64x32xbf16, #tpu.memory_space<vmem>>, vector<1x64x32xbf16>
    %21 = vector.shape_cast %20 : vector<1x64x32xbf16> to vector<64x32xbf16>
    %c0_29 = arith.constant 0 : index
    %c0_30 = arith.constant 0 : index
    %c0_31 = arith.constant 0 : index
    %22 = vector.load %arg12[%c0_29, %c0_30, %c0_31] : memref<1x1x32xf32, #tpu.memory_space<vmem>>, vector<1x1x32xf32>
    %23 = vector.shape_cast %22 : vector<1x1x32xf32> to vector<1x32xf32>
    %c0_32 = arith.constant 0 : index
    %c0_33 = arith.constant 0 : index
    %c0_34 = arith.constant 0 : index
    %24 = vector.load %arg13[%c0_32, %c0_33, %c0_34] : memref<1x1x32xf32, #tpu.memory_space<vmem>>, vector<1x1x32xf32>
    %25 = vector.shape_cast %24 : vector<1x1x32xf32> to vector<1x32xf32>
    %c0_35 = arith.constant 0 : index
    %c0_36 = arith.constant 0 : index
    %c0_37 = arith.constant 0 : index
    %26 = vector.load %arg14[%c0_35, %c0_36, %c0_37] : memref<1x1x32xf32, #tpu.memory_space<vmem>>, vector<1x1x32xf32>
    %27 = vector.shape_cast %26 : vector<1x1x32xf32> to vector<1x32xf32>
    %28 = arith.truncf %3 : vector<16x32xf32> to vector<16x32xbf16>
    %cst = arith.constant dense<0.000000e+00> : vector<16x96xf32>
    %29 = tpu.matmul %28, %5, %cst {dimension_numbers = #tpu.dot_dimension_numbers<[1], [0], [0], [1], [0, 0, 1, 1], [], []>} : vector<16x32xbf16>, vector<32x96xbf16>, vector<16x96xf32> -> vector<16x96xf32>
    %30 = vector.broadcast %7 : vector<1x96xf32> to vector<16x96xf32>
    %31 = arith.addf %29, %30 : vector<16x96xf32>
    %32 = vector.extract_strided_slice %31 {offsets = [0, 0], sizes = [16, 32], strides = [1, 1]} : vector<16x96xf32> to vector<16x32xf32>
    %33 = vector.shape_cast %32 : vector<16x32xf32> to vector<2x8x32xf32>
    %34 = vector.extract_strided_slice %31 {offsets = [0, 32], sizes = [16, 32], strides = [1, 1]} : vector<16x96xf32> to vector<16x32xf32>
    %35 = vector.shape_cast %34 : vector<16x32xf32> to vector<2x8x32xf32>
    %36 = vector.extract_strided_slice %31 {offsets = [0, 64], sizes = [16, 32], strides = [1, 1]} : vector<16x96xf32> to vector<16x32xf32>
    %37 = vector.shape_cast %36 : vector<16x32xf32> to vector<2x8x32xf32>
    %38 = tpu.iota {dimensions = array<i32: 2>} : vector<2x1x8xi32>
    %c0_38 = arith.constant 0 : index
    %c0_39 = arith.constant 0 : index
    %c0_40 = arith.constant 0 : index
    %39 = vector.load %arg2[%c0_38, %c0_39, %c0_40] : memref<2x1x1xi32, #tpu.memory_space<vmem>>, vector<2x1x1xi32>
    %40 = vector.broadcast %39 : vector<2x1x1xi32> to vector<2x1x8xi32>
    %41 = arith.cmpi slt, %38, %40 : vector<2x1x8xi32>
    %cst_41 = arith.constant 0.000000e+00 : f32
    %cst_42 = arith.constant -1.000000e+06 : f32
    %42 = vector.broadcast %cst_41 : f32 to vector<2x1x8xf32>
    %43 = vector.broadcast %cst_42 : f32 to vector<2x1x8xf32>
    %44 = arith.select %41, %42, %43 : vector<2x1x8xi1>, vector<2x1x8xf32>
    %cst_43 = arith.constant 0.000000e+00 : f32
    %45 = vector.broadcast %cst_43 : f32 to vector<16x32xf32>
    %46 = vector.extract_strided_slice %33 {offsets = [0, 0, 0], sizes = [2, 8, 16], strides = [1, 1, 1]} : vector<2x8x32xf32> to vector<2x8x16xf32>
    %47 = arith.truncf %46 : vector<2x8x16xf32> to vector<2x8x16xbf16>
    %48 = vector.extract_strided_slice %35 {offsets = [0, 0, 0], sizes = [2, 8, 16], strides = [1, 1, 1]} : vector<2x8x32xf32> to vector<2x8x16xf32>
    %49 = arith.truncf %48 : vector<2x8x16xf32> to vector<2x8x16xbf16>
    %50 = vector.extract_strided_slice %37 {offsets = [0, 0, 0], sizes = [2, 8, 16], strides = [1, 1, 1]} : vector<2x8x32xf32> to vector<2x8x16xf32>
    %51 = arith.truncf %50 : vector<2x8x16xf32> to vector<2x8x16xbf16>
    "tpu.trace_start"() <{level = 10 : i32, message = "bqd,bkd->bqk"}> : () -> ()
    %cst_44 = arith.constant dense<0.000000e+00> : vector<2x8x8xf32>
    %52 = tpu.matmul %47, %49, %cst_44 {dimension_numbers = #tpu.dot_dimension_numbers<[2], [2], [1], [1], [0, 0, 0, 1, 1, 1], [0], [0]>} : vector<2x8x16xbf16>, vector<2x8x16xbf16>, vector<2x8x8xf32> -> vector<2x8x8xf32>
    "tpu.trace_stop"() : () -> ()
    %cst_45 = arith.constant 2.500000e-01 : f32
    %53 = vector.broadcast %cst_45 : f32 to vector<2x8x8xf32>
    %54 = arith.mulf %52, %53 : vector<2x8x8xf32>
    %55 = vector.broadcast %44 : vector<2x1x8xf32> to vector<2x8x8xf32>
    %56 = arith.addf %54, %55 : vector<2x8x8xf32>
    %cst_46 = arith.constant dense<0xFF800000> : vector<2x8xf32>
    %57 = vector.multi_reduction <maximumf>, %56, %cst_46 [2] : vector<2x8x8xf32> to vector<2x8xf32>
    %58 = vector.shape_cast %57 : vector<2x8xf32> to vector<2x8x1xf32>
    %59 = vector.broadcast %58 : vector<2x8x1xf32> to vector<2x8x8xf32>
    %60 = arith.subf %56, %59 : vector<2x8x8xf32>
    %61 = math.exp %60 : vector<2x8x8xf32>
    %cst_47 = arith.constant dense<0.000000e+00> : vector<2x8xf32>
    %62 = vector.multi_reduction <add>, %61, %cst_47 [2] : vector<2x8x8xf32> to vector<2x8xf32>
    %63 = vector.shape_cast %62 : vector<2x8xf32> to vector<2x8x1xf32>
    %64 = tpu.reciprocal %63 {approx = true} : vector<2x8x1xf32> -> vector<2x8x1xf32>
    %65 = vector.broadcast %64 : vector<2x8x1xf32> to vector<2x8x8xf32>
    %66 = arith.mulf %61, %65 : vector<2x8x8xf32>
    %67 = arith.truncf %66 : vector<2x8x8xf32> to vector<2x8x8xbf16>
    "tpu.trace_start"() <{level = 10 : i32, message = "bqk,bkd->bqd"}> : () -> ()
    %cst_48 = arith.constant dense<0.000000e+00> : vector<2x8x16xf32>
    %68 = tpu.matmul %67, %51, %cst_48 {dimension_numbers = #tpu.dot_dimension_numbers<[2], [1], [1], [2], [0, 0, 0, 1, 1, 2], [0], [0]>} : vector<2x8x8xbf16>, vector<2x8x16xbf16>, vector<2x8x16xf32> -> vector<2x8x16xf32>
    "tpu.trace_stop"() : () -> ()
    %69 = vector.shape_cast %68 : vector<2x8x16xf32> to vector<16x16xf32>
    %70 = arith.truncf %69 : vector<16x16xf32> to vector<16x16xbf16>
    %71 = vector.extract_strided_slice %9 {offsets = [0, 0], sizes = [16, 32], strides = [1, 1]} : vector<32x32xbf16> to vector<16x32xbf16>
    %cst_49 = arith.constant dense<0.000000e+00> : vector<16x32xf32>
    %72 = tpu.matmul %70, %71, %cst_49 {dimension_numbers = #tpu.dot_dimension_numbers<[1], [0], [0], [1], [0, 0, 1, 1], [], []>} : vector<16x16xbf16>, vector<16x32xbf16>, vector<16x32xf32> -> vector<16x32xf32>
    %73 = arith.addf %45, %72 : vector<16x32xf32>
    %74 = vector.extract_strided_slice %33 {offsets = [0, 0, 16], sizes = [2, 8, 16], strides = [1, 1, 1]} : vector<2x8x32xf32> to vector<2x8x16xf32>
    %75 = arith.truncf %74 : vector<2x8x16xf32> to vector<2x8x16xbf16>
    %76 = vector.extract_strided_slice %35 {offsets = [0, 0, 16], sizes = [2, 8, 16], strides = [1, 1, 1]} : vector<2x8x32xf32> to vector<2x8x16xf32>
    %77 = arith.truncf %76 : vector<2x8x16xf32> to vector<2x8x16xbf16>
    %78 = vector.extract_strided_slice %37 {offsets = [0, 0, 16], sizes = [2, 8, 16], strides = [1, 1, 1]} : vector<2x8x32xf32> to vector<2x8x16xf32>
    %79 = arith.truncf %78 : vector<2x8x16xf32> to vector<2x8x16xbf16>
    "tpu.trace_start"() <{level = 10 : i32, message = "bqd,bkd->bqk"}> : () -> ()
    %cst_50 = arith.constant dense<0.000000e+00> : vector<2x8x8xf32>
    %80 = tpu.matmul %75, %77, %cst_50 {dimension_numbers = #tpu.dot_dimension_numbers<[2], [2], [1], [1], [0, 0, 0, 1, 1, 1], [0], [0]>} : vector<2x8x16xbf16>, vector<2x8x16xbf16>, vector<2x8x8xf32> -> vector<2x8x8xf32>
    "tpu.trace_stop"() : () -> ()
    %cst_51 = arith.constant 2.500000e-01 : f32
    %81 = vector.broadcast %cst_51 : f32 to vector<2x8x8xf32>
    %82 = arith.mulf %80, %81 : vector<2x8x8xf32>
    %83 = vector.broadcast %44 : vector<2x1x8xf32> to vector<2x8x8xf32>
    %84 = arith.addf %82, %83 : vector<2x8x8xf32>
    %cst_52 = arith.constant dense<0xFF800000> : vector<2x8xf32>
    %85 = vector.multi_reduction <maximumf>, %84, %cst_52 [2] : vector<2x8x8xf32> to vector<2x8xf32>
    %86 = vector.shape_cast %85 : vector<2x8xf32> to vector<2x8x1xf32>
    %87 = vector.broadcast %86 : vector<2x8x1xf32> to vector<2x8x8xf32>
    %88 = arith.subf %84, %87 : vector<2x8x8xf32>
    %89 = math.exp %88 : vector<2x8x8xf32>
    %cst_53 = arith.constant dense<0.000000e+00> : vector<2x8xf32>
    %90 = vector.multi_reduction <add>, %89, %cst_53 [2] : vector<2x8x8xf32> to vector<2x8xf32>
    %91 = vector.shape_cast %90 : vector<2x8xf32> to vector<2x8x1xf32>
    %92 = tpu.reciprocal %91 {approx = true} : vector<2x8x1xf32> -> vector<2x8x1xf32>
    %93 = vector.broadcast %92 : vector<2x8x1xf32> to vector<2x8x8xf32>
    %94 = arith.mulf %89, %93 : vector<2x8x8xf32>
    %95 = arith.truncf %94 : vector<2x8x8xf32> to vector<2x8x8xbf16>
    "tpu.trace_start"() <{level = 10 : i32, message = "bqk,bkd->bqd"}> : () -> ()
    %cst_54 = arith.constant dense<0.000000e+00> : vector<2x8x16xf32>
    %96 = tpu.matmul %95, %79, %cst_54 {dimension_numbers = #tpu.dot_dimension_numbers<[2], [1], [1], [2], [0, 0, 0, 1, 1, 2], [0], [0]>} : vector<2x8x8xbf16>, vector<2x8x16xbf16>, vector<2x8x16xf32> -> vector<2x8x16xf32>
    "tpu.trace_stop"() : () -> ()
    %97 = vector.shape_cast %96 : vector<2x8x16xf32> to vector<16x16xf32>
    %98 = arith.truncf %97 : vector<16x16xf32> to vector<16x16xbf16>
    %99 = vector.extract_strided_slice %9 {offsets = [16, 0], sizes = [16, 32], strides = [1, 1]} : vector<32x32xbf16> to vector<16x32xbf16>
    %cst_55 = arith.constant dense<0.000000e+00> : vector<16x32xf32>
    %100 = tpu.matmul %98, %99, %cst_55 {dimension_numbers = #tpu.dot_dimension_numbers<[1], [0], [0], [1], [0, 0, 1, 1], [], []>} : vector<16x16xbf16>, vector<16x32xbf16>, vector<16x32xf32> -> vector<16x32xf32>
    %101 = arith.addf %73, %100 : vector<16x32xf32>
    %102 = vector.broadcast %11 : vector<1x32xf32> to vector<16x32xf32>
    %103 = arith.addf %101, %102 : vector<16x32xf32>
    %104 = arith.addf %3, %103 : vector<16x32xf32>
    %cst_56 = arith.constant dense<0.000000e+00> : vector<16xf32>
    %105 = vector.multi_reduction <add>, %104, %cst_56 [1] : vector<16x32xf32> to vector<16xf32>
    %106 = vector.shape_cast %105 : vector<16xf32> to vector<16x1xf32>
    %cst_57 = arith.constant 3.200000e+01 : f32
    %107 = vector.broadcast %cst_57 : f32 to vector<16x1xf32>
    %108 = arith.divf %106, %107 : vector<16x1xf32>
    %109 = vector.broadcast %108 : vector<16x1xf32> to vector<16x32xf32>
    %110 = arith.subf %104, %109 : vector<16x32xf32>
    %111 = arith.mulf %110, %110 : vector<16x32xf32>
    %cst_58 = arith.constant dense<0.000000e+00> : vector<16xf32>
    %112 = vector.multi_reduction <add>, %111, %cst_58 [1] : vector<16x32xf32> to vector<16xf32>
    %113 = vector.shape_cast %112 : vector<16xf32> to vector<16x1xf32>
    %cst_59 = arith.constant 3.200000e+01 : f32
    %114 = vector.broadcast %cst_59 : f32 to vector<16x1xf32>
    %115 = arith.divf %113, %114 : vector<16x1xf32>
    %116 = vector.broadcast %108 : vector<16x1xf32> to vector<16x32xf32>
    %117 = arith.subf %104, %116 : vector<16x32xf32>
    %cst_60 = arith.constant 9.99999974E-6 : f32
    %118 = vector.broadcast %cst_60 : f32 to vector<16x1xf32>
    %119 = arith.addf %115, %118 : vector<16x1xf32>
    %120 = math.rsqrt %119 : vector<16x1xf32>
    %121 = vector.broadcast %120 : vector<16x1xf32> to vector<16x32xf32>
    %122 = arith.mulf %117, %121 : vector<16x32xf32>
    %123 = vector.broadcast %13 : vector<1x32xf32> to vector<16x32xf32>
    %124 = arith.mulf %122, %123 : vector<16x32xf32>
    %125 = vector.broadcast %15 : vector<1x32xf32> to vector<16x32xf32>
    %126 = arith.addf %124, %125 : vector<16x32xf32>
    %127 = arith.truncf %126 : vector<16x32xf32> to vector<16x32xbf16>
    %cst_61 = arith.constant dense<0.000000e+00> : vector<16x64xf32>
    %128 = tpu.matmul %127, %17, %cst_61 {dimension_numbers = #tpu.dot_dimension_numbers<[1], [0], [0], [1], [0, 0, 1, 1], [], []>} : vector<16x32xbf16>, vector<32x64xbf16>, vector<16x64xf32> -> vector<16x64xf32>
    %129 = vector.broadcast %19 : vector<1x64xf32> to vector<16x64xf32>
    %130 = arith.addf %128, %129 : vector<16x64xf32>
    %cst_62 = arith.constant 0.000000e+00 : f32
    %131 = vector.broadcast %cst_62 : f32 to vector<16x64xf32>
    %132 = arith.maximumf %130, %131 : vector<16x64xf32>
    %133 = arith.truncf %132 : vector<16x64xf32> to vector<16x64xbf16>
    %cst_63 = arith.constant dense<0.000000e+00> : vector<16x32xf32>
    %134 = tpu.matmul %133, %21, %cst_63 {dimension_numbers = #tpu.dot_dimension_numbers<[1], [0], [0], [1], [0, 0, 1, 1], [], []>} : vector<16x64xbf16>, vector<64x32xbf16>, vector<16x32xf32> -> vector<16x32xf32>
    %135 = vector.broadcast %23 : vector<1x32xf32> to vector<16x32xf32>
    %136 = arith.addf %134, %135 : vector<16x32xf32>
    %137 = arith.addf %126, %136 : vector<16x32xf32>
    %cst_64 = arith.constant dense<0.000000e+00> : vector<16xf32>
    %138 = vector.multi_reduction <add>, %137, %cst_64 [1] : vector<16x32xf32> to vector<16xf32>
    %139 = vector.shape_cast %138 : vector<16xf32> to vector<16x1xf32>
    %cst_65 = arith.constant 3.200000e+01 : f32
    %140 = vector.broadcast %cst_65 : f32 to vector<16x1xf32>
    %141 = arith.divf %139, %140 : vector<16x1xf32>
    %142 = vector.broadcast %141 : vector<16x1xf32> to vector<16x32xf32>
    %143 = arith.subf %137, %142 : vector<16x32xf32>
    %144 = arith.mulf %143, %143 : vector<16x32xf32>
    %cst_66 = arith.constant dense<0.000000e+00> : vector<16xf32>
    %145 = vector.multi_reduction <add>, %144, %cst_66 [1] : vector<16x32xf32> to vector<16xf32>
    %146 = vector.shape_cast %145 : vector<16xf32> to vector<16x1xf32>
    %cst_67 = arith.constant 3.200000e+01 : f32
    %147 = vector.broadcast %cst_67 : f32 to vector<16x1xf32>
    %148 = arith.divf %146, %147 : vector<16x1xf32>
    %149 = vector.broadcast %141 : vector<16x1xf32> to vector<16x32xf32>
    %150 = arith.subf %137, %149 : vector<16x32xf32>
    %cst_68 = arith.constant 9.99999974E-6 : f32
    %151 = vector.broadcast %cst_68 : f32 to vector<16x1xf32>
    %152 = arith.addf %148, %151 : vector<16x1xf32>
    %153 = math.rsqrt %152 : vector<16x1xf32>
    %154 = vector.broadcast %153 : vector<16x1xf32> to vector<16x32xf32>
    %155 = arith.mulf %150, %154 : vector<16x32xf32>
    %156 = vector.broadcast %25 : vector<1x32xf32> to vector<16x32xf32>
    %157 = arith.mulf %155, %156 : vector<16x32xf32>
    %158 = vector.broadcast %27 : vector<1x32xf32> to vector<16x32xf32>
    %159 = arith.addf %157, %158 : vector<16x32xf32>
    %c0_69 = arith.constant 0 : index
    %c0_70 = arith.constant 0 : index
    %160 = vector.load %arg16[%c0_69, %c0_70] : memref<16x32xf32, #tpu.memory_space<vmem>>, vector<16x32xf32>
    tpu.vector_store %arg16[%c0_69, %c0_70], %159 {strides = array<i32>} : memref<16x32xf32, #tpu.memory_space<vmem>>, vector<16x32xf32>,
    %c1_i32 = arith.constant 1 : i32
    %161 = arith.cmpi eq, %arg0, %c1_i32 : i32
    %162 = arith.extui %161 : i1 to i32
    %c0_i32_71 = arith.constant 0 : i32
    %163 = arith.cmpi ne, %162, %c0_i32_71 : i32
    scf.if %163 {
      %c0_72 = arith.constant 0 : index
      %c0_73 = arith.constant 0 : index
      %164 = vector.load %arg15[%c0_72, %c0_73] : memref<16x32xf32, #tpu.memory_space<vmem>>, vector<16x32xf32>
      tpu.vector_store %arg15[%c0_72, %c0_73], %159 {strides = array<i32>} : memref<16x32xf32, #tpu.memory_space<vmem>>, vector<16x32xf32>,
    } else {
    }
    return
  }
  func.func @transform_0(%arg0: i32) -> (i32, i32) {
    %c0_i32 = arith.constant 0 : i32
    %c0_i32_0 = arith.constant 0 : i32
    %c0_i32_1 = arith.constant 0 : i32
    return %c0_i32, %c0_i32_0 : i32, i32
  }
  func.func @transform_1(%arg0: i32) -> (i32, i32, i32) {
    %c0_i32 = arith.constant 0 : i32
    %c0_i32_0 = arith.constant 0 : i32
    %c0_i32_1 = arith.constant 0 : i32
    %c0_i32_2 = arith.constant 0 : i32
    return %c0_i32, %c0_i32_0, %c0_i32_1 : i32, i32, i32
  }
  func.func @transform_2(%arg0: i32) -> (i32, i32, i32) {
    %c0_i32 = arith.constant 0 : i32
    %c0_i32_0 = arith.constant 0 : i32
    %c0_i32_1 = arith.constant 0 : i32
    return %arg0, %c0_i32, %c0_i32_0 : i32, i32, i32
  }
  func.func @transform_3(%arg0: i32) -> (i32, i32, i32) {
    %c0_i32 = arith.constant 0 : i32
    %c0_i32_0 = arith.constant 0 : i32
    %c0_i32_1 = arith.constant 0 : i32
    return %arg0, %c0_i32, %c0_i32_0 : i32, i32, i32
  }
  func.func @transform_4(%arg0: i32) -> (i32, i32, i32) {
    %c0_i32 = arith.constant 0 : i32
    %c0_i32_0 = arith.constant 0 : i32
    %c0_i32_1 = arith.constant 0 : i32
    return %arg0, %c0_i32, %c0_i32_0 : i32, i32, i32
  }
  func.func @transform_5(%arg0: i32) -> (i32, i32, i32) {
    %c0_i32 = arith.constant 0 : i32
    %c0_i32_0 = arith.constant 0 : i32
    %c0_i32_1 = arith.constant 0 : i32
    return %arg0, %c0_i32, %c0_i32_0 : i32, i32, i32
  }
  func.func @transform_6(%arg0: i32) -> (i32, i32, i32) {
    %c0_i32 = arith.constant 0 : i32
    %c0_i32_0 = arith.constant 0 : i32
    %c0_i32_1 = arith.constant 0 : i32
    return %arg0, %c0_i32, %c0_i32_0 : i32, i32, i32
  }
  func.func @transform_7(%arg0: i32) -> (i32, i32, i32) {
    %c0_i32 = arith.constant 0 : i32
    %c0_i32_0 = arith.constant 0 : i32
    %c0_i32_1 = arith.constant 0 : i32
    return %arg0, %c0_i32, %c0_i32_0 : i32, i32, i32
  }
  func.func @transform_8(%arg0: i32) -> (i32, i32, i32) {
    %c0_i32 = arith.constant 0 : i32
    %c0_i32_0 = arith.constant 0 : i32
    %c0_i32_1 = arith.constant 0 : i32
    return %arg0, %c0_i32, %c0_i32_0 : i32, i32, i32
  }
  func.func @transform_9(%arg0: i32) -> (i32, i32, i32) {
    %c0_i32 = arith.constant 0 : i32
    %c0_i32_0 = arith.constant 0 : i32
    %c0_i32_1 = arith.constant 0 : i32
    return %arg0, %c0_i32, %c0_i32_0 : i32, i32, i32
  }
  func.func @transform_10(%arg0: i32) -> (i32, i32, i32) {
    %c0_i32 = arith.constant 0 : i32
    %c0_i32_0 = arith.constant 0 : i32
    %c0_i32_1 = arith.constant 0 : i32
    return %arg0, %c0_i32, %c0_i32_0 : i32, i32, i32
  }
  func.func @transform_11(%arg0: i32) -> (i32, i32, i32) {
    %c0_i32 = arith.constant 0 : i32
    %c0_i32_0 = arith.constant 0 : i32
    %c0_i32_1 = arith.constant 0 : i32
    return %arg0, %c0_i32, %c0_i32_0 : i32, i32, i32
  }
  func.func @transform_12(%arg0: i32) -> (i32, i32, i32) {
    %c0_i32 = arith.constant 0 : i32
    %c0_i32_0 = arith.constant 0 : i32
    %c0_i32_1 = arith.constant 0 : i32
    return %arg0, %c0_i32, %c0_i32_0 : i32, i32, i32
  }
  func.func @transform_13(%arg0: i32) -> (i32, i32, i32) {
    %c0_i32 = arith.constant 0 : i32
    %c0_i32_0 = arith.constant 0 : i32
    %c0_i32_1 = arith.constant 0 : i32
    return %arg0, %c0_i32, %c0_i32_0 : i32, i32, i32
  }
  func.func @transform_14(%arg0: i32) -> (i32, i32) {
    %c0_i32 = arith.constant 0 : i32
    %c0_i32_0 = arith.constant 0 : i32
    %c0_i32_1 = arith.constant 0 : i32
    return %c0_i32, %c0_i32_0 : i32, i32
  }
}

</mosaic_0001>

<llo_original>
// kernel: tpu_custom_call.1
$region0: #{tpu_custom_call.1}
  #allocation0 [shape = 'u32[]', space=smem, size = 0x4, offset = 0x4, fixed_abs, tag = 'smem constant byte address 0x4 - core index']
  #allocation1 [shape = 'u32[144,128]{1,0:T(1,128)}', space=vmem, size = 0x12000, scoped, tag = 'internal scratch']
  #allocation2 [shape = 'f32[16,32]{1,0:T(8,128)}', space=vmem, size = 0x2000, scoped, tag = 'scratch operand']
  %s0 = inlined_call_operand.hbm [shape: f32[16,32], index: 0, kind: input, shape index: {}]
  %s1 = inlined_call_operand.vmem [shape: s32[2,1,1], index: 1, kind: input, shape index: {}]
  %s2 = inlined_call_operand.vmem [shape: bf16[2,32,96], index: 2, kind: input, shape index: {}]
  %s3 = inlined_call_operand.vmem [shape: f32[2,1,96], index: 3, kind: input, shape index: {}]
  %s4 = inlined_call_operand.vmem [shape: bf16[2,32,32], index: 4, kind: input, shape index: {}]
  %s5 = inlined_call_operand.vmem [shape: f32[2,1,32], index: 5, kind: input, shape index: {}]
  %s6 = inlined_call_operand.vmem [shape: f32[2,1,32], index: 6, kind: input, shape index: {}]
  %s7 = inlined_call_operand.vmem [shape: f32[2,1,32], index: 7, kind: input, shape index: {}]
  %s8 = inlined_call_operand.vmem [shape: bf16[2,32,64], index: 8, kind: input, shape index: {}]
  %s9 = inlined_call_operand.hbm [shape: f32[2,1,64], index: 9, kind: input, shape index: {}]
  %s10 = inlined_call_operand.vmem [shape: bf16[2,64,32], index: 10, kind: input, shape index: {}]
  %s11 = inlined_call_operand.vmem [shape: f32[2,1,32], index: 11, kind: input, shape index: {}]
  %s12 = inlined_call_operand.vmem [shape: f32[2,1,32], index: 12, kind: input, shape index: {}]
  %s13 = inlined_call_operand.vmem [shape: f32[2,1,32], index: 13, kind: input, shape index: {}]
  %s14 = inlined_call_operand.hbm [shape: f32[16,32], index: 14, kind: output, shape index: {}]
  %s15 = sld [smem:[#allocation0]]
  $region105: #{tpu_custom_call.1} parent=0
    _
  %s17 = ssub.s32 1, %s15
  %s18 = scalar_select 0, %s17, %s15
  $region1: #{tpu_custom_call.1} parent=0
    #allocation3 [shape = 'u8[8192]{0}', space=vmem, size = 0x2000, scoped, tag = 'input window, operand 0, single buffered']
    #allocation4 [shape = 's32[2]{0}', space=sflag, size = 0x8, scoped, tag = 'scoped memory for tpu_custom_call.1']
    #allocation5 [shape = 's32[2]{0}', space=sflag, size = 0x8, scoped, tag = 'scoped memory for tpu_custom_call.1']
    #allocation6 [shape = 'u8[1024]{0}', space=vmem, size = 0x400, scoped, tag = 'input window, operand 9']
    #allocation7 [shape = 's32[2]{0}', space=sflag, size = 0x8, scoped, tag = 'scoped memory for tpu_custom_call.1']
    #allocation8 [shape = 'u8[8192]{0}', space=vmem, size = 0x2000, scoped, tag = 'output window, operand 0, single buffered']
    %19 = vsyncpa [#allocation4], 0
    %20 = vsyncpa [#allocation7], 0
    %s21 = scalar_lea.sflag [#allocation7], 1
    %22 = vsyncpa %s21, 0
    %23 = vsyncpa [#allocation5], 0
    loop: start=0, step=1, limit=4
    $region2: #{tpu_custom_call.1} parent=1 // loop_pre_header
      _
    $region3: #{tpu_custom_call.1} parent=1 // loop_header
      %s25 = sphi 0, %s29
      %p26 = scmp.ge.s32.totalorder %s25, 4
      %s33 = sphi 0, %s33
      %s35 = sphi 0, %s33
      %s36 = sphi 0, %s35
      %s50 = sphi 0, %s36
      %s54 = sphi 0, %s54
      %s56 = sphi 0, %s54
      %s57 = sphi 0, %s56
      %s71 = sphi 0, %s57
      %s77 = sphi 0, %s79
      %s80 = sphi 0, %s77
      %s81 = sphi 0, %s80
      %s97 = sphi 0, %s81
      %s103 = sphi 0, %s105
      %s106 = sphi 0, %s103
      %s107 = sphi 0, %s106
      %s123 = sphi 0, %s107
      %s129 = sphi 0, %s131
      %s132 = sphi 0, %s129
      %s133 = sphi 0, %s132
      %s149 = sphi 0, %s133
      %s155 = sphi 0, %s157
      %s158 = sphi 0, %s155
      %s159 = sphi 0, %s158
      %s175 = sphi 0, %s159
      %s181 = sphi 0, %s183
      %s184 = sphi 0, %s181
      %s185 = sphi 0, %s184
      %s201 = sphi 0, %s185
      %s207 = sphi 0, %s209
      %s210 = sphi 0, %s207
      %s211 = sphi 0, %s210
      %s227 = sphi 0, %s211
      %s233 = sphi 0, %s235
      %s236 = sphi 0, %s233
      %s237 = sphi 0, %s236
      %s253 = sphi 0, %s237
      %s259 = sphi 0, %s261
      %s262 = sphi 0, %s259
      %s263 = sphi 0, %s262
      %s279 = sphi 0, %s263
      %s285 = sphi 0, %s287
      %s288 = sphi 0, %s285
      %s289 = sphi 0, %s288
      %s305 = sphi 0, %s289
      %s311 = sphi 0, %s313
      %s314 = sphi 0, %s311
      %s315 = sphi 0, %s314
      %s331 = sphi 0, %s315
      %s337 = sphi 0, %s339
      %s340 = sphi 0, %s337
      %s341 = sphi 0, %s340
      %s357 = sphi 0, %s341
      %s363 = sphi 0, %s365
      %s366 = sphi 0, %s363
      %s367 = sphi 0, %s366
      %s383 = sphi 0, %s367
      %s387 = sphi 0, %s387
      %s389 = sphi 0, %s387
      %s390 = sphi 0, %s389
      %s404 = sphi 0, %s390
    $region4: #{tpu_custom_call.1} parent=1 // loop_header_branch
      %28 = sbr.rel (%p26) target = $region8
    $region5: #{tpu_custom_call.1} parent=1 // loop_body
      %s30 = ssub.s32 %s25, 1
      %s31 = ssub.s32 %s25, 2
      %s32 = sadd.s32 %s25, 1
      %s34 = sadd.s32 %s33, 1
      %p37 = scmp.eq.s32.totalorder %s25, 1
      %p38 = scmp.ne.s32.totalorder %s33, %s35
      %p39 = scmp.eq.s32.totalorder %s25, 0
      %p40 = por %p38, %p39
      %p41 = scmp.ne.s32.totalorder %s33, %s35
      %p42 = scmp.eq.s32.totalorder %s30, 1
      %p43 = por %p41, %p42
      %p44 = scmp.ne.s32.totalorder %s35, %s36
      %p45 = scmp.eq.s32.totalorder %s30, 0
      %p46 = por %p44, %p45
      %p47 = scmp.ne.s32.totalorder %s35, %s36
      %p48 = scmp.eq.s32.totalorder %s31, 1
      %p49 = por %p47, %p48
      %p51 = scmp.ne.s32.totalorder %s36, %s50
      %p52 = scmp.eq.s32.totalorder %s31, 0
      %p53 = por %p51, %p52
      %s55 = sadd.s32 %s54, 1
      %p58 = scmp.eq.s32.totalorder %s25, 1
      %p59 = scmp.ne.s32.totalorder %s54, %s56
      %p60 = scmp.eq.s32.totalorder %s25, 0
      %p61 = por %p59, %p60
      %p62 = scmp.ne.s32.totalorder %s54, %s56
      %p63 = scmp.eq.s32.totalorder %s30, 1
      %p64 = por %p62, %p63
      %p65 = scmp.ne.s32.totalorder %s56, %s57
      %p66 = scmp.eq.s32.totalorder %s30, 0
      %p67 = por %p65, %p66
      %p68 = scmp.ne.s32.totalorder %s56, %s57
      %p69 = scmp.eq.s32.totalorder %s31, 1
      %p70 = por %p68, %p69
      %p72 = scmp.ne.s32.totalorder %s57, %s71
      %p73 = scmp.eq.s32.totalorder %s31, 0
      %p74 = por %p72, %p73
      %s75 = ssub.s32 %s25, %s32
      %p76 = scmp.eq.s32.totalorder %s75, 0
      %s78 = sadd.s32 %s77, 1
      %s79 = scalar_select %p76, %s77, %s78
      %p82 = pneg %p76
      %p83 = scmp.eq.s32.totalorder %s25, 1
      %p84 = por %p82, %p83
      %p85 = scmp.ne.s32.totalorder %s77, %s80
      %p86 = scmp.eq.s32.totalorder %s25, 0
      %p87 = por %p85, %p86
      %p88 = scmp.ne.s32.totalorder %s77, %s80
      %p89 = scmp.eq.s32.totalorder %s30, 1
      %p90 = por %p88, %p89
      %p91 = scmp.ne.s32.totalorder %s80, %s81
      %p92 = scmp.eq.s32.totalorder %s30, 0
      %p93 = por %p91, %p92
      %p94 = scmp.ne.s32.totalorder %s80, %s81
      %p95 = scmp.eq.s32.totalorder %s31, 1
      %p96 = por %p94, %p95
      %p98 = scmp.ne.s32.totalorder %s81, %s97
      %p99 = scmp.eq.s32.totalorder %s31, 0
      %p100 = por %p98, %p99
      %s101 = ssub.s32 %s25, %s32
      %p102 = scmp.eq.s32.totalorder %s101, 0
      %s104 = sadd.s32 %s103, 1
      %s105 = scalar_select %p102, %s103, %s104
      %p108 = pneg %p102
      %p109 = scmp.eq.s32.totalorder %s25, 1
      %p110 = por %p108, %p109
      %p111 = scmp.ne.s32.totalorder %s103, %s106
      %p112 = scmp.eq.s32.totalorder %s25, 0
      %p113 = por %p111, %p112
      %p114 = scmp.ne.s32.totalorder %s103, %s106
      %p115 = scmp.eq.s32.totalorder %s30, 1
      %p116 = por %p114, %p115
      %p117 = scmp.ne.s32.totalorder %s106, %s107
      %p118 = scmp.eq.s32.totalorder %s30, 0
      %p119 = por %p117, %p118
      %p120 = scmp.ne.s32.totalorder %s106, %s107
      %p121 = scmp.eq.s32.totalorder %s31, 1
      %p122 = por %p120, %p121
      %p124 = scmp.ne.s32.totalorder %s107, %s123
      %p125 = scmp.eq.s32.totalorder %s31, 0
      %p126 = por %p124, %p125
      %s127 = ssub.s32 %s25, %s32
      %p128 = scmp.eq.s32.totalorder %s127, 0
      %s130 = sadd.s32 %s129, 1
      %s131 = scalar_select %p128, %s129, %s130
      %p134 = pneg %p128
      %p135 = scmp.eq.s32.totalorder %s25, 1
      %p136 = por %p134, %p135
      %p137 = scmp.ne.s32.totalorder %s129, %s132
      %p138 = scmp.eq.s32.totalorder %s25, 0
      %p139 = por %p137, %p138
      %p140 = scmp.ne.s32.totalorder %s129, %s132
      %p141 = scmp.eq.s32.totalorder %s30, 1
      %p142 = por %p140, %p141
      %p143 = scmp.ne.s32.totalorder %s132, %s133
      %p144 = scmp.eq.s32.totalorder %s30, 0
      %p145 = por %p143, %p144
      %p146 = scmp.ne.s32.totalorder %s132, %s133
      %p147 = scmp.eq.s32.totalorder %s31, 1
      %p148 = por %p146, %p147
      %p150 = scmp.ne.s32.totalorder %s133, %s149
      %p151 = scmp.eq.s32.totalorder %s31, 0
      %p152 = por %p150, %p151
      %s153 = ssub.s32 %s25, %s32
      %p154 = scmp.eq.s32.totalorder %s153, 0
      %s156 = sadd.s32 %s155, 1
      %s157 = scalar_select %p154, %s155, %s156
      %p160 = pneg %p154
      %p161 = scmp.eq.s32.totalorder %s25, 1
      %p162 = por %p160, %p161
      %p163 = scmp.ne.s32.totalorder %s155, %s158
      %p164 = scmp.eq.s32.totalorder %s25, 0
      %p165 = por %p163, %p164
      %p166 = scmp.ne.s32.totalorder %s155, %s158
      %p167 = scmp.eq.s32.totalorder %s30, 1
      %p168 = por %p166, %p167
      %p169 = scmp.ne.s32.totalorder %s158, %s159
      %p170 = scmp.eq.s32.totalorder %s30, 0
      %p171 = por %p169, %p170
      %p172 = scmp.ne.s32.totalorder %s158, %s159
      %p173 = scmp.eq.s32.totalorder %s31, 1
      %p174 = por %p172, %p173
      %p176 = scmp.ne.s32.totalorder %s159, %s175
      %p177 = scmp.eq.s32.totalorder %s31, 0
      %p178 = por %p176, %p177
      %s179 = ssub.s32 %s25, %s32
      %p180 = scmp.eq.s32.totalorder %s179, 0
      %s182 = sadd.s32 %s181, 1
      %s183 = scalar_select %p180, %s181, %s182
      %p186 = pneg %p180
      %p187 = scmp.eq.s32.totalorder %s25, 1
      %p188 = por %p186, %p187
      %p189 = scmp.ne.s32.totalorder %s181, %s184
      %p190 = scmp.eq.s32.totalorder %s25, 0
      %p191 = por %p189, %p190
      %p192 = scmp.ne.s32.totalorder %s181, %s184
      %p193 = scmp.eq.s32.totalorder %s30, 1
      %p194 = por %p192, %p193
      %p195 = scmp.ne.s32.totalorder %s184, %s185
      %p196 = scmp.eq.s32.totalorder %s30, 0
      %p197 = por %p195, %p196
      %p198 = scmp.ne.s32.totalorder %s184, %s185
      %p199 = scmp.eq.s32.totalorder %s31, 1
      %p200 = por %p198, %p199
      %p202 = scmp.ne.s32.totalorder %s185, %s201
      %p203 = scmp.eq.s32.totalorder %s31, 0
      %p204 = por %p202, %p203
      %s205 = ssub.s32 %s25, %s32
      %p206 = scmp.eq.s32.totalorder %s205, 0
      %s208 = sadd.s32 %s207, 1
      %s209 = scalar_select %p206, %s207, %s208
      %p212 = pneg %p206
      %p213 = scmp.eq.s32.totalorder %s25, 1
      %p214 = por %p212, %p213
      %p215 = scmp.ne.s32.totalorder %s207, %s210
      %p216 = scmp.eq.s32.totalorder %s25, 0
      %p217 = por %p215, %p216
      %p218 = scmp.ne.s32.totalorder %s207, %s210
      %p219 = scmp.eq.s32.totalorder %s30, 1
      %p220 = por %p218, %p219
      %p221 = scmp.ne.s32.totalorder %s210, %s211
      %p222 = scmp.eq.s32.totalorder %s30, 0
      %p223 = por %p221, %p222
      %p224 = scmp.ne.s32.totalorder %s210, %s211
      %p225 = scmp.eq.s32.totalorder %s31, 1
      %p226 = por %p224, %p225
      %p228 = scmp.ne.s32.totalorder %s211, %s227
      %p229 = scmp.eq.s32.totalorder %s31, 0
      %p230 = por %p228, %p229
      %s231 = ssub.s32 %s25, %s32
      %p232 = scmp.eq.s32.totalorder %s231, 0
      %s234 = sadd.s32 %s233, 1
      %s235 = scalar_select %p232, %s233, %s234
      %p238 = pneg %p232
      %p239 = scmp.eq.s32.totalorder %s25, 1
      %p240 = por %p238, %p239
      %p241 = scmp.ne.s32.totalorder %s233, %s236
      %p242 = scmp.eq.s32.totalorder %s25, 0
      %p243 = por %p241, %p242
      %p244 = scmp.ne.s32.totalorder %s233, %s236
      %p245 = scmp.eq.s32.totalorder %s30, 1
      %p246 = por %p244, %p245
      %p247 = scmp.ne.s32.totalorder %s236, %s237
      %p248 = scmp.eq.s32.totalorder %s30, 0
      %p249 = por %p247, %p248
      %p250 = scmp.ne.s32.totalorder %s236, %s237
      %p251 = scmp.eq.s32.totalorder %s31, 1
      %p252 = por %p250, %p251
      %p254 = scmp.ne.s32.totalorder %s237, %s253
      %p255 = scmp.eq.s32.totalorder %s31, 0
      %p256 = por %p254, %p255
      %s257 = ssub.s32 %s25, %s32
      %p258 = scmp.eq.s32.totalorder %s257, 0
      %s260 = sadd.s32 %s259, 1
      %s261 = scalar_select %p258, %s259, %s260
      %p264 = pneg %p258
      %p265 = scmp.eq.s32.totalorder %s25, 1
      %p266 = por %p264, %p265
      %p267 = scmp.ne.s32.totalorder %s259, %s262
      %p268 = scmp.eq.s32.totalorder %s25, 0
      %p269 = por %p267, %p268
      %p270 = scmp.ne.s32.totalorder %s259, %s262
      %p271 = scmp.eq.s32.totalorder %s30, 1
      %p272 = por %p270, %p271
      %p273 = scmp.ne.s32.totalorder %s262, %s263
      %p274 = scmp.eq.s32.totalorder %s30, 0
      %p275 = por %p273, %p274
      %p276 = scmp.ne.s32.totalorder %s262, %s263
      %p277 = scmp.eq.s32.totalorder %s31, 1
      %p278 = por %p276, %p277
      %p280 = scmp.ne.s32.totalorder %s263, %s279
      %p281 = scmp.eq.s32.totalorder %s31, 0
      %p282 = por %p280, %p281
      %s283 = ssub.s32 %s25, %s32
      %p284 = scmp.eq.s32.totalorder %s283, 0
      %s286 = sadd.s32 %s285, 1
      %s287 = scalar_select %p284, %s285, %s286
      %p290 = pneg %p284
      %p291 = scmp.eq.s32.totalorder %s25, 1
      %p292 = por %p290, %p291
      %p293 = scmp.ne.s32.totalorder %s285, %s288
      %p294 = scmp.eq.s32.totalorder %s25, 0
      %p295 = por %p293, %p294
      %p296 = scmp.ne.s32.totalorder %s285, %s288
      %p297 = scmp.eq.s32.totalorder %s30, 1
      %p298 = por %p296, %p297
      %p299 = scmp.ne.s32.totalorder %s288, %s289
      %p300 = scmp.eq.s32.totalorder %s30, 0
      %p301 = por %p299, %p300
      %p302 = scmp.ne.s32.totalorder %s288, %s289
      %p303 = scmp.eq.s32.totalorder %s31, 1
      %p304 = por %p302, %p303
      %p306 = scmp.ne.s32.totalorder %s289, %s305
      %p307 = scmp.eq.s32.totalorder %s31, 0
      %p308 = por %p306, %p307
      %s309 = ssub.s32 %s25, %s32
      %p310 = scmp.eq.s32.totalorder %s309, 0
      %s312 = sadd.s32 %s311, 1
      %s313 = scalar_select %p310, %s311, %s312
      %p316 = pneg %p310
      %p317 = scmp.eq.s32.totalorder %s25, 1
      %p318 = por %p316, %p317
      %p319 = scmp.ne.s32.totalorder %s311, %s314
      %p320 = scmp.eq.s32.totalorder %s25, 0
      %p321 = por %p319, %p320
      %p322 = scmp.ne.s32.totalorder %s311, %s314
      %p323 = scmp.eq.s32.totalorder %s30, 1
      %p324 = por %p322, %p323
      %p325 = scmp.ne.s32.totalorder %s314, %s315
      %p326 = scmp.eq.s32.totalorder %s30, 0
      %p327 = por %p325, %p326
      %p328 = scmp.ne.s32.totalorder %s314, %s315
      %p329 = scmp.eq.s32.totalorder %s31, 1
      %p330 = por %p328, %p329
      %p332 = scmp.ne.s32.totalorder %s315, %s331
      %p333 = scmp.eq.s32.totalorder %s31, 0
      %p334 = por %p332, %p333
      %s335 = ssub.s32 %s25, %s32
      %p336 = scmp.eq.s32.totalorder %s335, 0
      %s338 = sadd.s32 %s337, 1
      %s339 = scalar_select %p336, %s337, %s338
      %p342 = pneg %p336
      %p343 = scmp.eq.s32.totalorder %s25, 1
      %p344 = por %p342, %p343
      %p345 = scmp.ne.s32.totalorder %s337, %s340
      %p346 = scmp.eq.s32.totalorder %s25, 0
      %p347 = por %p345, %p346
      %p348 = scmp.ne.s32.totalorder %s337, %s340
      %p349 = scmp.eq.s32.totalorder %s30, 1
      %p350 = por %p348, %p349
      %p351 = scmp.ne.s32.totalorder %s340, %s341
      %p352 = scmp.eq.s32.totalorder %s30, 0
      %p353 = por %p351, %p352
      %p354 = scmp.ne.s32.totalorder %s340, %s341
      %p355 = scmp.eq.s32.totalorder %s31, 1
      %p356 = por %p354, %p355
      %p358 = scmp.ne.s32.totalorder %s341, %s357
      %p359 = scmp.eq.s32.totalorder %s31, 0
      %p360 = por %p358, %p359
      %s361 = ssub.s32 %s25, %s32
      %p362 = scmp.eq.s32.totalorder %s361, 0
      %s364 = sadd.s32 %s363, 1
      %s365 = scalar_select %p362, %s363, %s364
      %p368 = pneg %p362
      %p369 = scmp.eq.s32.totalorder %s25, 1
      %p370 = por %p368, %p369
      %p371 = scmp.ne.s32.totalorder %s363, %s366
      %p372 = scmp.eq.s32.totalorder %s25, 0
      %p373 = por %p371, %p372
      %p374 = scmp.ne.s32.totalorder %s363, %s366
      %p375 = scmp.eq.s32.totalorder %s30, 1
      %p376 = por %p374, %p375
      %p377 = scmp.ne.s32.totalorder %s366, %s367
      %p378 = scmp.eq.s32.totalorder %s30, 0
      %p379 = por %p377, %p378
      %p380 = scmp.ne.s32.totalorder %s366, %s367
      %p381 = scmp.eq.s32.totalorder %s31, 1
      %p382 = por %p380, %p381
      %p384 = scmp.ne.s32.totalorder %s367, %s383
      %p385 = scmp.eq.s32.totalorder %s31, 0
      %p386 = por %p384, %p385
      %s388 = sadd.s32 %s387, 1
      %p391 = scmp.eq.s32.totalorder %s25, 1
      %p392 = scmp.ne.s32.totalorder %s387, %s389
      %p393 = scmp.eq.s32.totalorder %s25, 0
      %p394 = por %p392, %p393
      %p395 = scmp.ne.s32.totalorder %s387, %s389
      %p396 = scmp.eq.s32.totalorder %s30, 1
      %p397 = por %p395, %p396
      %p398 = scmp.ne.s32.totalorder %s389, %s390
      %p399 = scmp.eq.s32.totalorder %s30, 0
      %p400 = por %p398, %p399
      %p401 = scmp.ne.s32.totalorder %s389, %s390
      %p402 = scmp.eq.s32.totalorder %s31, 1
      %p403 = por %p401, %p402
      %p405 = scmp.ne.s32.totalorder %s390, %s404
      %p406 = scmp.eq.s32.totalorder %s31, 0
      %p407 = por %p405, %p406
      %p408 = scmp.le.s32.totalorder 1, %s25
      %p409 = scmp.lt.s32.totalorder %s25, 3
      %p410 = pnand %p408, %p409
      %p411 = pneg %p410
      // Predicated region
      $region9: #{tpu_custom_call.1} parent=5 // pred_check
        _
      $region10: #{tpu_custom_call.1} parent=5 // pred_check_branch
        %413 = sbr.rel (%p410) target = $region12
      $region11: #{tpu_custom_call.1} parent=5 // pred_region
        %s414 = ssub.s32 %s25, 1
        // Predicated region
        $region13: #{tpu_custom_call.1} parent=11 // pred_check
          %p415 = pneg %p46
        $region14: #{tpu_custom_call.1} parent=11 // pred_check_branch
          %417 = sbr.rel (%p415) target = $region16
        $region15: #{tpu_custom_call.1} parent=11 // pred_region
          %s419 = ssub.s32 256, 256
          %420 = vsyncadd [#allocation4], %s419
          %s421 = sshll.u32 [#allocation3], 4
          %s422 = int_to_ptr.vmem [resolvable:$true] %s421
          %427 = dma.hbm_to_vmem [thread:$0]  %s0, 256, %s422, [#allocation4], 128, 128, 8
        $region16: #{tpu_custom_call.1} parent=11 // pred_fallthru
          _
        // Predicated region
        $region17: #{tpu_custom_call.1} parent=11 // pred_check
          %p428 = pneg %p67
        $region18: #{tpu_custom_call.1} parent=11 // pred_check_branch
          %430 = sbr.rel (%p428) target = $region20
        $region19: #{tpu_custom_call.1} parent=11 // pred_region
          _
        $region20: #{tpu_custom_call.1} parent=11 // pred_fallthru
          _
      $region12: #{tpu_custom_call.1} parent=5 // pred_fallthru
        _
      %p431 = scmp.lt.s32.totalorder %s25, 2
      // Predicated region
      $region21: #{tpu_custom_call.1} parent=5 // pred_check
        %p432 = pneg %p431
      $region22: #{tpu_custom_call.1} parent=5 // pred_check_branch
        %434 = sbr.rel (%p432) target = $region24
      $region23: #{tpu_custom_call.1} parent=5 // pred_region
        // Predicated region
        $region25: #{tpu_custom_call.1} parent=23 // pred_check
          %p435 = pneg %p87
        $region26: #{tpu_custom_call.1} parent=23 // pred_check_branch
          %437 = sbr.rel (%p435) target = $region28
        $region27: #{tpu_custom_call.1} parent=23 // pred_region
          %p438 = scmp.lt.s32.totalorder %s25, 1
          %s439 = scalar_select %p438, %s25, 1
          %s440 = smul.addr %s439, 4
          %s441 = smul.addr %s440, 4
          %s442 = scalar_lea.vmem %s2, %s441
        $region28: #{tpu_custom_call.1} parent=23 // pred_fallthru
          _
        // Predicated region
        $region29: #{tpu_custom_call.1} parent=23 // pred_check
          %p443 = pneg %p113
        $region30: #{tpu_custom_call.1} parent=23 // pred_check_branch
          %445 = sbr.rel (%p443) target = $region32
        $region31: #{tpu_custom_call.1} parent=23 // pred_region
          %p446 = scmp.lt.s32.totalorder %s25, 1
          %s447 = scalar_select %p446, %s25, 1
          %s448 = scalar_lea.vmem %s3, %s447
        $region32: #{tpu_custom_call.1} parent=23 // pred_fallthru
          _
        // Predicated region
        $region33: #{tpu_custom_call.1} parent=23 // pred_check
          %p449 = pneg %p139
        $region34: #{tpu_custom_call.1} parent=23 // pred_check_branch
          %451 = sbr.rel (%p449) target = $region36
        $region35: #{tpu_custom_call.1} parent=23 // pred_region
          %p452 = scmp.lt.s32.totalorder %s25, 1
          %s453 = scalar_select %p452, %s25, 1
          %s454 = smul.addr %s453, 4
          %s455 = smul.addr %s454, 4
          %s456 = scalar_lea.vmem %s4, %s455
        $region36: #{tpu_custom_call.1} parent=23 // pred_fallthru
          _
        // Predicated region
        $region37: #{tpu_custom_call.1} parent=23 // pred_check
          %p457 = pneg %p165
        $region38: #{tpu_custom_call.1} parent=23 // pred_check_branch
          %459 = sbr.rel (%p457) target = $region40
        $region39: #{tpu_custom_call.1} parent=23 // pred_region
          %p460 = scmp.lt.s32.totalorder %s25, 1
          %s461 = scalar_select %p460, %s25, 1
          %s462 = scalar_lea.vmem %s5, %s461
        $region40: #{tpu_custom_call.1} parent=23 // pred_fallthru
          _
        // Predicated region
        $region41: #{tpu_custom_call.1} parent=23 // pred_check
          %p463 = pneg %p191
        $region42: #{tpu_custom_call.1} parent=23 // pred_check_branch
          %465 = sbr.rel (%p463) target = $region44
        $region43: #{tpu_custom_call.1} parent=23 // pred_region
          %p466 = scmp.lt.s32.totalorder %s25, 1
          %s467 = scalar_select %p466, %s25, 1
          %s468 = scalar_lea.vmem %s6, %s467
        $region44: #{tpu_custom_call.1} parent=23 // pred_fallthru
          _
        // Predicated region
        $region45: #{tpu_custom_call.1} parent=23 // pred_check
          %p469 = pneg %p217
        $region46: #{tpu_custom_call.1} parent=23 // pred_check_branch
          %471 = sbr.rel (%p469) target = $region48
        $region47: #{tpu_custom_call.1} parent=23 // pred_region
          %p472 = scmp.lt.s32.totalorder %s25, 1
          %s473 = scalar_select %p472, %s25, 1
          %s474 = scalar_lea.vmem %s7, %s473
        $region48: #{tpu_custom_call.1} parent=23 // pred_fallthru
          _
        // Predicated region
        $region49: #{tpu_custom_call.1} parent=23 // pred_check
          %p475 = pneg %p243
        $region50: #{tpu_custom_call.1} parent=23 // pred_check_branch
          %477 = sbr.rel (%p475) target = $region52
        $region51: #{tpu_custom_call.1} parent=23 // pred_region
          %p478 = scmp.lt.s32.totalorder %s25, 1
          %s479 = scalar_select %p478, %s25, 1
          %s480 = smul.addr %s479, 4
          %s481 = smul.addr %s480, 4
          %s482 = scalar_lea.vmem %s8, %s481
        $region52: #{tpu_custom_call.1} parent=23 // pred_fallthru
          _
        // Predicated region
        $region53: #{tpu_custom_call.1} parent=23 // pred_check
          %p483 = pneg %p269
        $region54: #{tpu_custom_call.1} parent=23 // pred_check_branch
          %485 = sbr.rel (%p483) target = $region56
        $region55: #{tpu_custom_call.1} parent=23 // pred_region
          %s486 = sand.u32 %s259, 1
          %s487 = scalar_lea.sflag [#allocation7], %s486
          %s488 = sand.u32 %s259, 1
          %s489 = scalar_lea.vmem [#allocation6], %s488
          %s491 = ssub.s32 16, 16
          %492 = vsyncadd %s487, %s491
          %s493 = smul.addr %s25, 16
          %s494 = scalar_lea.hbm %s9, %s493
          %s496 = sshll.u32 %s489, 4
          %s497 = int_to_ptr.vmem [resolvable:$true] %s496
          %499 = dma.hbm_to_vmem [thread:$0]  %s494, 16, %s497, %s487
        $region56: #{tpu_custom_call.1} parent=23 // pred_fallthru
          _
        // Predicated region
        $region57: #{tpu_custom_call.1} parent=23 // pred_check
          %p500 = pneg %p295
        $region58: #{tpu_custom_call.1} parent=23 // pred_check_branch
          %502 = sbr.rel (%p500) target = $region60
        $region59: #{tpu_custom_call.1} parent=23 // pred_region
          %p503 = scmp.lt.s32.totalorder %s25, 1
          %s504 = scalar_select %p503, %s25, 1
          %s505 = smul.addr %s504, 8
          %s506 = smul.addr %s505, 4
          %s507 = scalar_lea.vmem %s10, %s506
        $region60: #{tpu_custom_call.1} parent=23 // pred_fallthru
          _
        // Predicated region
        $region61: #{tpu_custom_call.1} parent=23 // pred_check
          %p508 = pneg %p321
        $region62: #{tpu_custom_call.1} parent=23 // pred_check_branch
          %510 = sbr.rel (%p508) target = $region64
        $region63: #{tpu_custom_call.1} parent=23 // pred_region
          %p511 = scmp.lt.s32.totalorder %s25, 1
          %s512 = scalar_select %p511, %s25, 1
          %s513 = scalar_lea.vmem %s11, %s512
        $region64: #{tpu_custom_call.1} parent=23 // pred_fallthru
          _
        // Predicated region
        $region65: #{tpu_custom_call.1} parent=23 // pred_check
          %p514 = pneg %p347
        $region66: #{tpu_custom_call.1} parent=23 // pred_check_branch
          %516 = sbr.rel (%p514) target = $region68
        $region67: #{tpu_custom_call.1} parent=23 // pred_region
          %p517 = scmp.lt.s32.totalorder %s25, 1
          %s518 = scalar_select %p517, %s25, 1
          %s519 = scalar_lea.vmem %s12, %s518
        $region68: #{tpu_custom_call.1} parent=23 // pred_fallthru
          _
        // Predicated region
        $region69: #{tpu_custom_call.1} parent=23 // pred_check
          %p520 = pneg %p373
        $region70: #{tpu_custom_call.1} parent=23 // pred_check_branch
          %522 = sbr.rel (%p520) target = $region72
        $region71: #{tpu_custom_call.1} parent=23 // pred_region
          %p523 = scmp.lt.s32.totalorder %s25, 1
          %s524 = scalar_select %p523, %s25, 1
          %s525 = scalar_lea.vmem %s13, %s524
        $region72: #{tpu_custom_call.1} parent=23 // pred_fallthru
          _
      $region24: #{tpu_custom_call.1} parent=5 // pred_fallthru
        _
      %p526 = scmp.le.s32.totalorder 1, %s25
      %p527 = scmp.lt.s32.totalorder %s25, 3
      %p528 = pnand %p526, %p527
      %p529 = pneg %p528
      // Predicated region
      $region73: #{tpu_custom_call.1} parent=5 // pred_check
        _
      $region74: #{tpu_custom_call.1} parent=5 // pred_check_branch
        %531 = sbr.rel (%p528) target = $region76
      $region75: #{tpu_custom_call.1} parent=5 // pred_region
        %s532 = ssub.s32 %s25, 1
        // Predicated region
        $region77: #{tpu_custom_call.1} parent=75 // pred_check
          %p533 = pneg %p46
        $region78: #{tpu_custom_call.1} parent=75 // pred_check_branch
          %535 = sbr.rel (%p533) target = $region80
        $region79: #{tpu_custom_call.1} parent=75 // pred_region
          %536 = dma.done [#allocation4], 256
        $region80: #{tpu_custom_call.1} parent=75 // pred_fallthru
          _
        %s537 = sand.u32 %s262, 1
        %s538 = scalar_lea.sflag [#allocation7], %s537
        %s539 = sand.u32 %s262, 1
        %s540 = scalar_lea.vmem [#allocation6], %s539
        // Predicated region
        $region81: #{tpu_custom_call.1} parent=75 // pred_check
          %p541 = pneg %p275
        $region82: #{tpu_custom_call.1} parent=75 // pred_check_branch
          %543 = sbr.rel (%p541) target = $region84
        $region83: #{tpu_custom_call.1} parent=75 // pred_region
          %544 = dma.done %s538, 16
        $region84: #{tpu_custom_call.1} parent=75 // pred_fallthru
          _
        %p545 = pneg %p46
        %p546 = pneg %p43
        %p547 = pneg %p67
        %p548 = pneg %p64
        %p549 = scmp.lt.s32.totalorder %s30, 1
        %s550 = scalar_select %p549, %s30, 1
        %s551 = smul.addr %s550, 4
        %s552 = smul.addr %s551, 4
        %s553 = scalar_lea.vmem %s2, %s552
        %p554 = pneg %p93
        %p555 = pneg %p90
        %p556 = scmp.lt.s32.totalorder %s30, 1
        %s557 = scalar_select %p556, %s30, 1
        %s558 = scalar_lea.vmem %s3, %s557
        %p559 = pneg %p119
        %p560 = pneg %p116
        %p561 = scmp.lt.s32.totalorder %s30, 1
        %s562 = scalar_select %p561, %s30, 1
        %s563 = smul.addr %s562, 4
        %s564 = smul.addr %s563, 4
        %s565 = scalar_lea.vmem %s4, %s564
        %p566 = pneg %p145
        %p567 = pneg %p142
        %p568 = scmp.lt.s32.totalorder %s30, 1
        %s569 = scalar_select %p568, %s30, 1
        %s570 = scalar_lea.vmem %s5, %s569
        %p571 = pneg %p171
        %p572 = pneg %p168
        %p573 = scmp.lt.s32.totalorder %s30, 1
        %s574 = scalar_select %p573, %s30, 1
        %s575 = scalar_lea.vmem %s6, %s574
        %p576 = pneg %p197
        %p577 = pneg %p194
        %p578 = scmp.lt.s32.totalorder %s30, 1
        %s579 = scalar_select %p578, %s30, 1
        %s580 = scalar_lea.vmem %s7, %s579
        %p581 = pneg %p223
        %p582 = pneg %p220
        %p583 = scmp.lt.s32.totalorder %s30, 1
        %s584 = scalar_select %p583, %s30, 1
        %s585 = smul.addr %s584, 4
        %s586 = smul.addr %s585, 4
        %s587 = scalar_lea.vmem %s8, %s586
        %p588 = pneg %p249
        %p589 = pneg %p246
        %s590 = sand.u32 %s262, 1
        %s591 = scalar_lea.sflag [#allocation7], %s590
        %s592 = sand.u32 %s262, 1
        %s593 = scalar_lea.vmem [#allocation6], %s592
        %p594 = pneg %p275
        %p595 = pneg %p272
        %p596 = scmp.lt.s32.totalorder %s30, 1
        %s597 = scalar_select %p596, %s30, 1
        %s598 = smul.addr %s597, 8
        %s599 = smul.addr %s598, 4
        %s600 = scalar_lea.vmem %s10, %s599
        %p601 = pneg %p301
        %p602 = pneg %p298
        %p603 = scmp.lt.s32.totalorder %s30, 1
        %s604 = scalar_select %p603, %s30, 1
        %s605 = scalar_lea.vmem %s11, %s604
        %p606 = pneg %p327
        %p607 = pneg %p324
        %p608 = scmp.lt.s32.totalorder %s30, 1
        %s609 = scalar_select %p608, %s30, 1
        %s610 = scalar_lea.vmem %s12, %s609
        %p611 = pneg %p353
        %p612 = pneg %p350
        %p613 = scmp.lt.s32.totalorder %s30, 1
        %s614 = scalar_select %p613, %s30, 1
        %s615 = scalar_lea.vmem %s13, %s614
        %p616 = pneg %p379
        %p617 = pneg %p376
        %p618 = pneg %p400
        %p619 = pneg %p397
        %p620 = scmp.lt.s32.totalorder %s30, 1
        %s621 = scalar_select %p620, %s30, 1
        %s622 = smul.addr %s621, 4
        %s623 = smul.addr %s622, 4
        %s624 = scalar_lea.vmem %s2, %s623
        %p625 = scmp.lt.s32.totalorder %s30, 1
        %s626 = scalar_select %p625, %s30, 1
        %s627 = scalar_lea.vmem %s3, %s626
        %p628 = scmp.lt.s32.totalorder %s30, 1
        %s629 = scalar_select %p628, %s30, 1
        %s630 = smul.addr %s629, 4
        %s631 = smul.addr %s630, 4
        %s632 = scalar_lea.vmem %s4, %s631
        %p633 = scmp.lt.s32.totalorder %s30, 1
        %s634 = scalar_select %p633, %s30, 1
        %s635 = scalar_lea.vmem %s5, %s634
        %p636 = scmp.lt.s32.totalorder %s30, 1
        %s637 = scalar_select %p636, %s30, 1
        %s638 = scalar_lea.vmem %s6, %s637
        %p639 = scmp.lt.s32.totalorder %s30, 1
        %s640 = scalar_select %p639, %s30, 1
        %s641 = scalar_lea.vmem %s7, %s640
        %p642 = scmp.lt.s32.totalorder %s30, 1
        %s643 = scalar_select %p642, %s30, 1
        %s644 = smul.addr %s643, 4
        %s645 = smul.addr %s644, 4
        %s646 = scalar_lea.vmem %s8, %s645
        %p647 = scmp.lt.s32.totalorder %s30, 1
        %s648 = scalar_select %p647, %s30, 1
        %s649 = smul.addr %s648, 8
        %s650 = smul.addr %s649, 4
        %s651 = scalar_lea.vmem %s10, %s650
        %p652 = scmp.lt.s32.totalorder %s30, 1
        %s653 = scalar_select %p652, %s30, 1
        %s654 = scalar_lea.vmem %s11, %s653
        %p655 = scmp.lt.s32.totalorder %s30, 1
        %s656 = scalar_select %p655, %s30, 1
        %s657 = scalar_lea.vmem %s12, %s656
        %p658 = scmp.lt.s32.totalorder %s30, 1
        %s659 = scalar_select %p658, %s30, 1
        %s660 = scalar_lea.vmem %s13, %s659
        %p662 = scmp.eq.s32.totalorder %s30, 0
        // Predicated region
        $region85: #{tpu_custom_call.1} parent=75 // pred_check
          %p663 = pneg %p662
        $region86: #{tpu_custom_call.1} parent=75 // pred_check_branch
          %665 = sbr.rel (%p663) target = $region88
        $region87: #{tpu_custom_call.1} parent=75 // pred_region
          %v666 = vld [vmem:[#allocation3] sm:$0xff]
          %v667 = vld [vmem:[#allocation3 + $0x8] sm:$0xff]
          %vm668 = vcmask 261120
          %669 = vst.msk [vmem:[#allocation2] sm:$0xff] %vm668, %v666
          %670 = vst.msk [vmem:[#allocation2 + $0x8] sm:$0xff] %vm668, %v667
        $region88: #{tpu_custom_call.1} parent=75 // pred_fallthru
          _
        %v671 = vld [vmem:[#allocation2] sm:$0xff]
        %v672 = vld [vmem:[#allocation2 + $0x8] sm:$0xff]
        %v673 = vld [vmem:[%s624] sm:$0xf]
        %v674 = vld [vmem:[%s624 + $0x4] sm:$0xf]
        %v675 = vld [vmem:[%s624 + $0x8] sm:$0xf]
        %v676 = vld [vmem:[%s624 + $0xc] sm:$0xf]
        %v677 = vld [vmem:[%s627] sm:$0x1]
        %v678 = vld [vmem:[%s632] sm:$0xf]
        %v679 = vld [vmem:[%s632 + $0x4] sm:$0xf]
        %v680 = vld [vmem:[%s632 + $0x8] sm:$0xf]
        %v681 = vld [vmem:[%s632 + $0xc] sm:$0xf]
        %v682 = vld [vmem:[%s635] sm:$0x1]
        %v683 = vld [vmem:[%s638] sm:$0x1]
        %v684 = vld [vmem:[%s641] sm:$0x1]
        %v685 = vld [vmem:[%s646] sm:$0xf]
        %v686 = vld [vmem:[%s646 + $0x4] sm:$0xf]
        %v687 = vld [vmem:[%s646 + $0x8] sm:$0xf]
        %v688 = vld [vmem:[%s646 + $0xc] sm:$0xf]
        %v689 = vld [vmem:[%s540] sm:$0x1]
        %v690 = vld [vmem:[%s651] sm:$0xf]
        %v691 = vld [vmem:[%s651 + $0x4] sm:$0xf]
        %v692 = vld [vmem:[%s651 + $0x8] sm:$0xf]
        %v693 = vld [vmem:[%s651 + $0xc] sm:$0xf]
        %v694 = vld [vmem:[%s651 + $0x10] sm:$0xf]
        %v695 = vld [vmem:[%s651 + $0x14] sm:$0xf]
        %v696 = vld [vmem:[%s651 + $0x18] sm:$0xf]
        %v697 = vld [vmem:[%s651 + $0x1c] sm:$0xf]
        %v698 = vld [vmem:[%s654] sm:$0x1]
        %v699 = vld [vmem:[%s657] sm:$0x1]
        %v700 = vld [vmem:[%s660] sm:$0x1]
        %v701 = vpack.c.bf16 %v672, %v671
        %v703 = vlaneseq
        %v704 = vshrl.u32 %v703, 7
        %v705 = vsub.s32 0, %v704
        %v706 = vrot.slane %v677, %v705
        %v712 = vunpack.c.l.b16 %v673
        %v713 = vunpack.c.l.b16 %v674
        %v714 = vunpack.c.l.b16 %v675
        %v715 = vunpack.c.l.b16 %v676
        %v716 = vpack.c.b16 %v713, %v712
        %v717 = vpack.c.b16 %v715, %v714
        %vm720 = vcmask 261120
        %v722 = vsel %vm720, %v701, 0
        %724 = vmatprep.subr.bf16.mxu0 0
        %725 = vmatpush1.bf16.msra.mxu0 %v716
        %726 = vmatprep.subr.bf16.mxu0 0
        %727 = vmatpush1.bf16.msra.mxu0 %v717
        %728 = vmatprep.subr.bf16.mxu0 0
        %729 = vmatpush1.bf16.msra.mxu0 0
        %730 = vmatprep.subr.bf16.mxu0 0
        %731 = vmatpush1.bf16.msra.mxu0 0
        %732 = vmatprep.subr.bf16.mxu0 0
        %733 = vmatpush1.bf16.msra.mxu0 0
        %734 = vmatprep.subr.bf16.mxu0 0
        %735 = vmatpush1.bf16.msra.mxu0 0
        %736 = vmatprep.subr.bf16.mxu0 0
        %737 = vmatpush1.bf16.msra.mxu0 0
        %738 = vmatprep.subr.bf16.mxu0 0
        %739 = vmatpush1.bf16.msra.mxu0 0
        %740 = vmatprep.subr.bf16.mxu0 0
        %741 = vmatpush1.bf16.msra.mxu0 0
        %742 = vmatprep.subr.bf16.mxu0 0
        %743 = vmatpush1.bf16.msra.mxu0 0
        %744 = vmatprep.subr.bf16.mxu0 0
        %745 = vmatpush1.bf16.msra.mxu0 0
        %746 = vmatprep.subr.bf16.mxu0 0
        %747 = vmatpush1.bf16.msra.mxu0 0
        %748 = vmatprep.subr.bf16.mxu0 0
        %749 = vmatpush1.bf16.msra.mxu0 0
        %750 = vmatprep.subr.bf16.mxu0 0
        %751 = vmatpush1.bf16.msra.mxu0 0
        %752 = vmatprep.subr.bf16.mxu0 0
        %753 = vmatpush1.bf16.msra.mxu0 0
        %754 = vmatprep.subr.bf16.mxu0 0
        %755 = vmatpush1.bf16.msra.mxu0 0
        %756 = vmatprep.mubr.bf16.mxu0 0
        %757 = vmatmul.mubr.bf16.gmra.mrb[0].mxu0 %v722
        %v758 = vpop.f32.mrb[0].mxu0
        %v759 = vadd.f32 %v706, %v758
        %v760 = vpop.f32.mrb[0].mxu0
        %v761 = vpop.f32.mrb[0].mxu0
        %v762 = vadd.f32 %v706, %v761
        %v763 = vpop.f32.mrb[0].mxu0
        %764 = vdwg.mxu0
        %v765 = vlaneseq
        %v766 = vand.u32 %v765, 127
        %v767 = vld [vmem:[%s1] sm:$0x1]
        %v768 = vld [vmem:[%s1 + $0x1] sm:$0x1]
        %769 = vset.pattern.permute.xlu0 0
        %770 = vperm.xlu0 %769, %v767
        %v771 = vpop.permute.xlu0 %770
        %v772 = vlaneseq
        %v773 = vshrl.u32 %v772, 7
        %v774 = vsub.s32 0, %v773
        %v775 = vrot.slane %v771, %v774
        %776 = vset.pattern.permute.xlu0 0
        %777 = vperm.xlu0 %776, %v768
        %v778 = vpop.permute.xlu0 %777
        %v779 = vlaneseq
        %v780 = vshrl.u32 %v779, 7
        %v781 = vsub.s32 0, %v780
        %v782 = vrot.slane %v778, %v781
        %vm783 = vcmp.lt.s32.totalorder %v766, %v775
        %vm784 = vcmp.lt.s32.totalorder %v766, %v782
        %v785 = vsel %vm783, 0.0, -1000000.0
        %v786 = vsel %vm784, 0.0, -1000000.0
        %v787 = vpack.c.bf16 %v759, %v759
        %v788 = vpack.c.bf16 %v762, %v762
        %790 = vrot.lane.b32.xlu0 %v787, 96
        %v791 = vpop.permute.xlu0 %790
        %vm792 = vcmask 130048
        %v794 = vsel %vm792, %v787, 0
        %v797 = vsel %vm792, %v791, 0
        %799 = vmatprep.subr.bf16.mxu0 0
        %800 = vmatpush1.bf16.xpose.msra.mxu0 %v797
        %801 = vmatprep.subr.bf16.mxu0 0
        %802 = vmatpush1.bf16.xpose.msra.mxu0 0
        %803 = vmatprep.subr.bf16.mxu0 0
        %804 = vmatpush1.bf16.xpose.msra.mxu0 0
        %805 = vmatprep.subr.bf16.mxu0 0
        %806 = vmatpush1.bf16.xpose.msra.mxu0 0
        %807 = vmatprep.subr.bf16.mxu0 0
        %808 = vmatpush1.bf16.xpose.msra.mxu0 0
        %809 = vmatprep.subr.bf16.mxu0 0
        %810 = vmatpush1.bf16.xpose.msra.mxu0 0
        %811 = vmatprep.subr.bf16.mxu0 0
        %812 = vmatpush1.bf16.xpose.msra.mxu0 0
        %813 = vmatprep.subr.bf16.mxu0 0
        %814 = vmatpush1.bf16.xpose.msra.mxu0 0
        %815 = vmatprep.subr.bf16.mxu0 0
        %816 = vmatpush1.bf16.xpose.msra.mxu0 0
        %817 = vmatprep.subr.bf16.mxu0 0
        %818 = vmatpush1.bf16.xpose.msra.mxu0 0
        %819 = vmatprep.subr.bf16.mxu0 0
        %820 = vmatpush1.bf16.xpose.msra.mxu0 0
        %821 = vmatprep.subr.bf16.mxu0 0
        %822 = vmatpush1.bf16.xpose.msra.mxu0 0
        %823 = vmatprep.subr.bf16.mxu0 0
        %824 = vmatpush1.bf16.xpose.msra.mxu0 0
        %825 = vmatprep.subr.bf16.mxu0 0
        %826 = vmatpush1.bf16.xpose.msra.mxu0 0
        %827 = vmatprep.subr.bf16.mxu0 0
        %828 = vmatpush1.bf16.xpose.msra.mxu0 0
        %829 = vmatprep.subr.bf16.mxu0 0
        %830 = vmatpush1.bf16.xpose.msra.mxu0 0
        %831 = vmatprep.mubr.bf16.mxu0 0
        %832 = vmatmul.mubr.bf16.gmra.mrb[0].mxu0 %v794
        %v833 = vpop.f32.mrb[0].mxu0
        %v834 = vadd.f32 0.0, %v833
        %v835 = vpop.f32.mrb[0].mxu0
        %v836 = vpop.f32.mrb[0].mxu0
        %v837 = vpop.f32.mrb[0].mxu0
        %838 = vdwg.mxu0
        %840 = vrot.lane.b32.xlu0 %v788, 96
        %v841 = vpop.permute.xlu0 %840
        %v843 = vsel %vm792, %v788, 0
        %v846 = vsel %vm792, %v841, 0
        %848 = vmatprep.subr.bf16.mxu0 0
        %849 = vmatpush1.bf16.xpose.msra.mxu0 %v846
        %850 = vmatprep.subr.bf16.mxu0 0
        %851 = vmatpush1.bf16.xpose.msra.mxu0 0
        %852 = vmatprep.subr.bf16.mxu0 0
        %853 = vmatpush1.bf16.xpose.msra.mxu0 0
        %854 = vmatprep.subr.bf16.mxu0 0
        %855 = vmatpush1.bf16.xpose.msra.mxu0 0
        %856 = vmatprep.subr.bf16.mxu0 0
        %857 = vmatpush1.bf16.xpose.msra.mxu0 0
        %858 = vmatprep.subr.bf16.mxu0 0
        %859 = vmatpush1.bf16.xpose.msra.mxu0 0
        %860 = vmatprep.subr.bf16.mxu0 0
        %861 = vmatpush1.bf16.xpose.msra.mxu0 0
        %862 = vmatprep.subr.bf16.mxu0 0
        %863 = vmatpush1.bf16.xpose.msra.mxu0 0
        %864 = vmatprep.subr.bf16.mxu0 0
        %865 = vmatpush1.bf16.xpose.msra.mxu0 0
        %866 = vmatprep.subr.bf16.mxu0 0
        %867 = vmatpush1.bf16.xpose.msra.mxu0 0
        %868 = vmatprep.subr.bf16.mxu0 0
        %869 = vmatpush1.bf16.xpose.msra.mxu0 0
        %870 = vmatprep.subr.bf16.mxu0 0
        %871 = vmatpush1.bf16.xpose.msra.mxu0 0
        %872 = vmatprep.subr.bf16.mxu0 0
        %873 = vmatpush1.bf16.xpose.msra.mxu0 0
        %874 = vmatprep.subr.bf16.mxu0 0
        %875 = vmatpush1.bf16.xpose.msra.mxu0 0
        %876 = vmatprep.subr.bf16.mxu0 0
        %877 = vmatpush1.bf16.xpose.msra.mxu0 0
        %878 = vmatprep.subr.bf16.mxu0 0
        %879 = vmatpush1.bf16.xpose.msra.mxu0 0
        %880 = vmatprep.mubr.bf16.mxu0 0
        %881 = vmatmul.mubr.bf16.gmra.mrb[0].mxu0 %v843
        %v882 = vpop.f32.mrb[0].mxu0
        %v883 = vadd.f32 0.0, %v882
        %v884 = vpop.f32.mrb[0].mxu0
        %v885 = vpop.f32.mrb[0].mxu0
        %v886 = vpop.f32.mrb[0].mxu0
        %887 = vdwg.mxu0
        %v888 = vmul.f32 %v834, 0.25
        %v889 = vmul.f32 %v883, 0.25
        %v890 = vadd.f32 %v888, %v785
        %v891 = vadd.f32 %v889, %v786
        %vm892 = vcmask 64512
        %v893 = vsel %vm892, %v890, -inf
        %894 = vmax.xlane.f32.xlu0 %v893
        %v895 = vpop.xlane.xlu0 %894
        %v896 = vsel %vm892, %v891, -inf
        %897 = vmax.xlane.f32.xlu0 %v896
        %v898 = vpop.xlane.xlu0 %897
        %v899 = vsub.f32 %v890, %v895
        %v900 = vsub.f32 %v891, %v898
        %v901 = vmul.f32 %v899, 1.442695
        %v902 = vpow.pop %v901
        %v903 = vmul.f32 %v900, 1.442695
        %v904 = vpow.pop %v903
        %v905 = vsel %vm892, %v902, 0.0
        %906 = vadd.xlane.f32.xlu0 %v905
        %v907 = vpop.xlane.xlu0 %906
        %v908 = vsel %vm892, %v904, 0.0
        %909 = vadd.xlane.f32.xlu0 %v908
        %v910 = vpop.xlane.xlu0 %909
        %v911 = vrcp.pop %v907
        %v912 = vrcp.pop %v910
        %v913 = vmul.f32 %v902, %v911
        %v914 = vmul.f32 %v904, %v912
        %v915 = vpack.c.bf16 %v913, %v913
        %v916 = vpack.c.bf16 %v914, %v914
        %917 = vrot.lane.b32.xlu0 %v787, 64
        %v918 = vpop.permute.xlu0 %917
        %v920 = vsel %vm892, %v915, 0
        %vm922 = vcmask 1043456
        %v924 = vsel %vm922, %v918, 0
        %926 = vmatprep.subr.bf16.mxu0 0
        %927 = vmatpush1.bf16.msra.mxu0 %v924
        %928 = vmatprep.subr.bf16.mxu0 0
        %929 = vmatpush1.bf16.msra.mxu0 0
        %930 = vmatprep.subr.bf16.mxu0 0
        %931 = vmatpush1.bf16.msra.mxu0 0
        %932 = vmatprep.subr.bf16.mxu0 0
        %933 = vmatpush1.bf16.msra.mxu0 0
        %934 = vmatprep.subr.bf16.mxu0 0
        %935 = vmatpush1.bf16.msra.mxu0 0
        %936 = vmatprep.subr.bf16.mxu0 0
        %937 = vmatpush1.bf16.msra.mxu0 0
        %938 = vmatprep.subr.bf16.mxu0 0
        %939 = vmatpush1.bf16.msra.mxu0 0
        %940 = vmatprep.subr.bf16.mxu0 0
        %941 = vmatpush1.bf16.msra.mxu0 0
        %942 = vmatprep.subr.bf16.mxu0 0
        %943 = vmatpush1.bf16.msra.mxu0 0
        %944 = vmatprep.subr.bf16.mxu0 0
        %945 = vmatpush1.bf16.msra.mxu0 0
        %946 = vmatprep.subr.bf16.mxu0 0
        %947 = vmatpush1.bf16.msra.mxu0 0
        %948 = vmatprep.subr.bf16.mxu0 0
        %949 = vmatpush1.bf16.msra.mxu0 0
        %950 = vmatprep.subr.bf16.mxu0 0
        %951 = vmatpush1.bf16.msra.mxu0 0
        %952 = vmatprep.subr.bf16.mxu0 0
        %953 = vmatpush1.bf16.msra.mxu0 0
        %954 = vmatprep.subr.bf16.mxu0 0
        %955 = vmatpush1.bf16.msra.mxu0 0
        %956 = vmatprep.subr.bf16.mxu0 0
        %957 = vmatpush1.bf16.msra.mxu0 0
        %958 = vmatprep.mubr.bf16.mxu0 0
        %959 = vmatmul.mubr.bf16.gmra.mrb[0].mxu0 %v920
        %v960 = vpop.f32.mrb[0].mxu0
        %v961 = vadd.f32 0.0, %v960
        %v962 = vpop.f32.mrb[0].mxu0
        %v963 = vpop.f32.mrb[0].mxu0
        %v964 = vpop.f32.mrb[0].mxu0
        %965 = vdwg.mxu0
        %966 = vrot.lane.b32.xlu0 %v788, 64
        %v967 = vpop.permute.xlu0 %966
        %v969 = vsel %vm892, %v916, 0
        %v972 = vsel %vm922, %v967, 0
        %974 = vmatprep.subr.bf16.mxu0 0
        %975 = vmatpush1.bf16.msra.mxu0 %v972
        %976 = vmatprep.subr.bf16.mxu0 0
        %977 = vmatpush1.bf16.msra.mxu0 0
        %978 = vmatprep.subr.bf16.mxu0 0
        %979 = vmatpush1.bf16.msra.mxu0 0
        %980 = vmatprep.subr.bf16.mxu0 0
        %981 = vmatpush1.bf16.msra.mxu0 0
        %982 = vmatprep.subr.bf16.mxu0 0
        %983 = vmatpush1.bf16.msra.mxu0 0
        %984 = vmatprep.subr.bf16.mxu0 0
        %985 = vmatpush1.bf16.msra.mxu0 0
        %986 = vmatprep.subr.bf16.mxu0 0
        %987 = vmatpush1.bf16.msra.mxu0 0
        %988 = vmatprep.subr.bf16.mxu0 0
        %989 = vmatpush1.bf16.msra.mxu0 0
        %990 = vmatprep.subr.bf16.mxu0 0
        %991 = vmatpush1.bf16.msra.mxu0 0
        %992 = vmatprep.subr.bf16.mxu0 0
        %993 = vmatpush1.bf16.msra.mxu0 0
        %994 = vmatprep.subr.bf16.mxu0 0
        %995 = vmatpush1.bf16.msra.mxu0 0
        %996 = vmatprep.subr.bf16.mxu0 0
        %997 = vmatpush1.bf16.msra.mxu0 0
        %998 = vmatprep.subr.bf16.mxu0 0
        %999 = vmatpush1.bf16.msra.mxu0 0
        %1000 = vmatprep.subr.bf16.mxu0 0
        %1001 = vmatpush1.bf16.msra.mxu0 0
        %1002 = vmatprep.subr.bf16.mxu0 0
        %1003 = vmatpush1.bf16.msra.mxu0 0
        %1004 = vmatprep.subr.bf16.mxu0 0
        %1005 = vmatpush1.bf16.msra.mxu0 0
        %1006 = vmatprep.mubr.bf16.mxu0 0
        %1007 = vmatmul.mubr.bf16.gmra.mrb[0].mxu0 %v969
        %v1008 = vpop.f32.mrb[0].mxu0
        %v1009 = vadd.f32 0.0, %v1008
        %v1010 = vpop.f32.mrb[0].mxu0
        %v1011 = vpop.f32.mrb[0].mxu0
        %v1012 = vpop.f32.mrb[0].mxu0
        %1013 = vdwg.mxu0
        %v1014 = vpack.c.bf16 %v1009, %v961
        %1015 = vrot.lane.b32.xlu0 %v787, 112
        %v1016 = vpop.permute.xlu0 %1015
        %1017 = vrot.lane.b32.xlu0 %v787, 80
        %v1018 = vpop.permute.xlu0 %1017
        %v1020 = vsel %vm792, %v1016, 0
        %v1023 = vsel %vm792, %v1018, 0
        %1025 = vmatprep.subr.bf16.mxu0 0
        %1026 = vmatpush1.bf16.xpose.msra.mxu0 %v1023
        %1027 = vmatprep.subr.bf16.mxu0 0
        %1028 = vmatpush1.bf16.xpose.msra.mxu0 0
        %1029 = vmatprep.subr.bf16.mxu0 0
        %1030 = vmatpush1.bf16.xpose.msra.mxu0 0
        %1031 = vmatprep.subr.bf16.mxu0 0
        %1032 = vmatpush1.bf16.xpose.msra.mxu0 0
        %1033 = vmatprep.subr.bf16.mxu0 0
        %1034 = vmatpush1.bf16.xpose.msra.mxu0 0
        %1035 = vmatprep.subr.bf16.mxu0 0
        %1036 = vmatpush1.bf16.xpose.msra.mxu0 0
        %1037 = vmatprep.subr.bf16.mxu0 0
        %1038 = vmatpush1.bf16.xpose.msra.mxu0 0
        %1039 = vmatprep.subr.bf16.mxu0 0
        %1040 = vmatpush1.bf16.xpose.msra.mxu0 0
        %1041 = vmatprep.subr.bf16.mxu0 0
        %1042 = vmatpush1.bf16.xpose.msra.mxu0 0
        %1043 = vmatprep.subr.bf16.mxu0 0
        %1044 = vmatpush1.bf16.xpose.msra.mxu0 0
        %1045 = vmatprep.subr.bf16.mxu0 0
        %1046 = vmatpush1.bf16.xpose.msra.mxu0 0
        %1047 = vmatprep.subr.bf16.mxu0 0
        %1048 = vmatpush1.bf16.xpose.msra.mxu0 0
        %1049 = vmatprep.subr.bf16.mxu0 0
        %1050 = vmatpush1.bf16.xpose.msra.mxu0 0
        %1051 = vmatprep.subr.bf16.mxu0 0
        %1052 = vmatpush1.bf16.xpose.msra.mxu0 0
        %1053 = vmatprep.subr.bf16.mxu0 0
        %1054 = vmatpush1.bf16.xpose.msra.mxu0 0
        %1055 = vmatprep.subr.bf16.mxu0 0
        %1056 = vmatpush1.bf16.xpose.msra.mxu0 0
        %1057 = vmatprep.mubr.bf16.mxu0 0
        %1058 = vmatmul.mubr.bf16.gmra.mrb[0].mxu0 %v1020
        %v1059 = vpop.f32.mrb[0].mxu0
        %v1060 = vadd.f32 0.0, %v1059
        %v1061 = vpop.f32.mrb[0].mxu0
        %v1062 = vpop.f32.mrb[0].mxu0
        %v1063 = vpop.f32.mrb[0].mxu0
        %1064 = vdwg.mxu0
        %1065 = vrot.lane.b32.xlu0 %v788, 112
        %v1066 = vpop.permute.xlu0 %1065
        %1067 = vrot.lane.b32.xlu0 %v788, 80
        %v1068 = vpop.permute.xlu0 %1067
        %v1070 = vsel %vm792, %v1066, 0
        %v1073 = vsel %vm792, %v1068, 0
        %1075 = vmatprep.subr.bf16.mxu0 0
        %1076 = vmatpush1.bf16.xpose.msra.mxu0 %v1073
        %1077 = vmatprep.subr.bf16.mxu0 0
        %1078 = vmatpush1.bf16.xpose.msra.mxu0 0
        %1079 = vmatprep.subr.bf16.mxu0 0
        %1080 = vmatpush1.bf16.xpose.msra.mxu0 0
        %1081 = vmatprep.subr.bf16.mxu0 0
        %1082 = vmatpush1.bf16.xpose.msra.mxu0 0
        %1083 = vmatprep.subr.bf16.mxu0 0
        %1084 = vmatpush1.bf16.xpose.msra.mxu0 0
        %1085 = vmatprep.subr.bf16.mxu0 0
        %1086 = vmatpush1.bf16.xpose.msra.mxu0 0
        %1087 = vmatprep.subr.bf16.mxu0 0
        %1088 = vmatpush1.bf16.xpose.msra.mxu0 0
        %1089 = vmatprep.subr.bf16.mxu0 0
        %1090 = vmatpush1.bf16.xpose.msra.mxu0 0
        %1091 = vmatprep.subr.bf16.mxu0 0
        %1092 = vmatpush1.bf16.xpose.msra.mxu0 0
        %1093 = vmatprep.subr.bf16.mxu0 0
        %1094 = vmatpush1.bf16.xpose.msra.mxu0 0
        %1095 = vmatprep.subr.bf16.mxu0 0
        %1096 = vmatpush1.bf16.xpose.msra.mxu0 0
        %1097 = vmatprep.subr.bf16.mxu0 0
        %1098 = vmatpush1.bf16.xpose.msra.mxu0 0
        %1099 = vmatprep.subr.bf16.mxu0 0
        %1100 = vmatpush1.bf16.xpose.msra.mxu0 0
        %1101 = vmatprep.subr.bf16.mxu0 0
        %1102 = vmatpush1.bf16.xpose.msra.mxu0 0
        %1103 = vmatprep.subr.bf16.mxu0 0
        %1104 = vmatpush1.bf16.xpose.msra.mxu0 0
        %1105 = vmatprep.subr.bf16.mxu0 0
        %1106 = vmatpush1.bf16.xpose.msra.mxu0 0
        %1107 = vmatprep.mubr.bf16.mxu0 0
        %1108 = vmatmul.mubr.bf16.gmra.mrb[0].mxu0 %v1070
        %v1109 = vpop.f32.mrb[0].mxu0
        %v1110 = vadd.f32 0.0, %v1109
        %v1111 = vpop.f32.mrb[0].mxu0
        %v1112 = vpop.f32.mrb[0].mxu0
        %v1113 = vpop.f32.mrb[0].mxu0
        %1114 = vdwg.mxu0
        %v1115 = vmul.f32 %v1060, 0.25
        %v1116 = vmul.f32 %v1110, 0.25
        %v1117 = vadd.f32 %v1115, %v785
        %v1118 = vadd.f32 %v1116, %v786
        %v1119 = vsel %vm892, %v1117, -inf
        %1120 = vmax.xlane.f32.xlu0 %v1119
        %v1121 = vpop.xlane.xlu0 %1120
        %v1122 = vsel %vm892, %v1118, -inf
        %1123 = vmax.xlane.f32.xlu0 %v1122
        %v1124 = vpop.xlane.xlu0 %1123
        %v1125 = vsub.f32 %v1117, %v1121
        %v1126 = vsub.f32 %v1118, %v1124
        %v1127 = vmul.f32 %v1125, 1.442695
        %v1128 = vpow.pop %v1127
        %v1129 = vmul.f32 %v1126, 1.442695
        %v1130 = vpow.pop %v1129
        %v1131 = vsel %vm892, %v1128, 0.0
        %1132 = vadd.xlane.f32.xlu0 %v1131
        %v1133 = vpop.xlane.xlu0 %1132
        %v1134 = vsel %vm892, %v1130, 0.0
        %1135 = vadd.xlane.f32.xlu0 %v1134
        %v1136 = vpop.xlane.xlu0 %1135
        %v1137 = vrcp.pop %v1133
        %v1138 = vrcp.pop %v1136
        %v1139 = vmul.f32 %v1128, %v1137
        %v1140 = vmul.f32 %v1130, %v1138
        %v1141 = vpack.c.bf16 %v1139, %v1139
        %v1142 = vpack.c.bf16 %v1140, %v1140
        %1143 = vrot.lane.b32.xlu0 %v787, 48
        %v1144 = vpop.permute.xlu0 %1143
        %v1146 = vsel %vm892, %v1141, 0
        %v1149 = vsel %vm922, %v1144, 0
        %1151 = vmatprep.subr.bf16.mxu0 0
        %1152 = vmatpush1.bf16.msra.mxu0 %v1149
        %1153 = vmatprep.subr.bf16.mxu0 0
        %1154 = vmatpush1.bf16.msra.mxu0 0
        %1155 = vmatprep.subr.bf16.mxu0 0
        %1156 = vmatpush1.bf16.msra.mxu0 0
        %1157 = vmatprep.subr.bf16.mxu0 0
        %1158 = vmatpush1.bf16.msra.mxu0 0
        %1159 = vmatprep.subr.bf16.mxu0 0
        %1160 = vmatpush1.bf16.msra.mxu0 0
        %1161 = vmatprep.subr.bf16.mxu0 0
        %1162 = vmatpush1.bf16.msra.mxu0 0
        %1163 = vmatprep.subr.bf16.mxu0 0
        %1164 = vmatpush1.bf16.msra.mxu0 0
        %1165 = vmatprep.subr.bf16.mxu0 0
        %1166 = vmatpush1.bf16.msra.mxu0 0
        %1167 = vmatprep.subr.bf16.mxu0 0
        %1168 = vmatpush1.bf16.msra.mxu0 0
        %1169 = vmatprep.subr.bf16.mxu0 0
        %1170 = vmatpush1.bf16.msra.mxu0 0
        %1171 = vmatprep.subr.bf16.mxu0 0
        %1172 = vmatpush1.bf16.msra.mxu0 0
        %1173 = vmatprep.subr.bf16.mxu0 0
        %1174 = vmatpush1.bf16.msra.mxu0 0
        %1175 = vmatprep.subr.bf16.mxu0 0
        %1176 = vmatpush1.bf16.msra.mxu0 0
        %1177 = vmatprep.subr.bf16.mxu0 0
        %1178 = vmatpush1.bf16.msra.mxu0 0
        %1179 = vmatprep.subr.bf16.mxu0 0
        %1180 = vmatpush1.bf16.msra.mxu0 0
        %1181 = vmatprep.subr.bf16.mxu0 0
        %1182 = vmatpush1.bf16.msra.mxu0 0
        %1183 = vmatprep.mubr.bf16.mxu0 0
        %1184 = vmatmul.mubr.bf16.gmra.mrb[0].mxu0 %v1146
        %v1185 = vpop.f32.mrb[0].mxu0
        %v1186 = vadd.f32 0.0, %v1185
        %v1187 = vpop.f32.mrb[0].mxu0
        %v1188 = vpop.f32.mrb[0].mxu0
        %v1189 = vpop.f32.mrb[0].mxu0
        %1190 = vdwg.mxu0
        %1191 = vrot.lane.b32.xlu0 %v788, 48
        %v1192 = vpop.permute.xlu0 %1191
        %v1194 = vsel %vm892, %v1142, 0
        %v1197 = vsel %vm922, %v1192, 0
        %1199 = vmatprep.subr.bf16.mxu0 0
        %1200 = vmatpush1.bf16.msra.mxu0 %v1197
        %1201 = vmatprep.subr.bf16.mxu0 0
        %1202 = vmatpush1.bf16.msra.mxu0 0
        %1203 = vmatprep.subr.bf16.mxu0 0
        %1204 = vmatpush1.bf16.msra.mxu0 0
        %1205 = vmatprep.subr.bf16.mxu0 0
        %1206 = vmatpush1.bf16.msra.mxu0 0
        %1207 = vmatprep.subr.bf16.mxu0 0
        %1208 = vmatpush1.bf16.msra.mxu0 0
        %1209 = vmatprep.subr.bf16.mxu0 0
        %1210 = vmatpush1.bf16.msra.mxu0 0
        %1211 = vmatprep.subr.bf16.mxu0 0
        %1212 = vmatpush1.bf16.msra.mxu0 0
        %1213 = vmatprep.subr.bf16.mxu0 0
        %1214 = vmatpush1.bf16.msra.mxu0 0
        %1215 = vmatprep.subr.bf16.mxu0 0
        %1216 = vmatpush1.bf16.msra.mxu0 0
        %1217 = vmatprep.subr.bf16.mxu0 0
        %1218 = vmatpush1.bf16.msra.mxu0 0
        %1219 = vmatprep.subr.bf16.mxu0 0
        %1220 = vmatpush1.bf16.msra.mxu0 0
        %1221 = vmatprep.subr.bf16.mxu0 0
        %1222 = vmatpush1.bf16.msra.mxu0 0
        %1223 = vmatprep.subr.bf16.mxu0 0
        %1224 = vmatpush1.bf16.msra.mxu0 0
        %1225 = vmatprep.subr.bf16.mxu0 0
        %1226 = vmatpush1.bf16.msra.mxu0 0
        %1227 = vmatprep.subr.bf16.mxu0 0
        %1228 = vmatpush1.bf16.msra.mxu0 0
        %1229 = vmatprep.subr.bf16.mxu0 0
        %1230 = vmatpush1.bf16.msra.mxu0 0
        %1231 = vmatprep.mubr.bf16.mxu0 0
        %1232 = vmatmul.mubr.bf16.gmra.mrb[0].mxu0 %v1194
        %v1233 = vpop.f32.mrb[0].mxu0
        %v1234 = vadd.f32 0.0, %v1233
        %v1235 = vpop.f32.mrb[0].mxu0
        %v1236 = vpop.f32.mrb[0].mxu0
        %v1237 = vpop.f32.mrb[0].mxu0
        %1238 = vdwg.mxu0
        %v1239 = vpack.c.bf16 %v1234, %v1186
        %v1242 = vunpack.c.l.b16 %v680
        %v1243 = vunpack.c.l.b16 %v681
        %v1244 = vpack.c.b16 %v1243, %v1242
        %v1247 = vsel %vm792, %v1239, 0
        %1249 = vmatprep.subr.bf16.mxu0 0
        %1250 = vmatpush1.bf16.msra.mxu0 %v1244
        %1251 = vmatprep.subr.bf16.mxu0 0
        %1252 = vmatpush1.bf16.msra.mxu0 0
        %1253 = vmatprep.subr.bf16.mxu0 0
        %1254 = vmatpush1.bf16.msra.mxu0 0
        %1255 = vmatprep.subr.bf16.mxu0 0
        %1256 = vmatpush1.bf16.msra.mxu0 0
        %1257 = vmatprep.subr.bf16.mxu0 0
        %1258 = vmatpush1.bf16.msra.mxu0 0
        %1259 = vmatprep.subr.bf16.mxu0 0
        %1260 = vmatpush1.bf16.msra.mxu0 0
        %1261 = vmatprep.subr.bf16.mxu0 0
        %1262 = vmatpush1.bf16.msra.mxu0 0
        %1263 = vmatprep.subr.bf16.mxu0 0
        %1264 = vmatpush1.bf16.msra.mxu0 0
        %1265 = vmatprep.subr.bf16.mxu0 0
        %1266 = vmatpush1.bf16.msra.mxu0 0
        %1267 = vmatprep.subr.bf16.mxu0 0
        %1268 = vmatpush1.bf16.msra.mxu0 0
        %1269 = vmatprep.subr.bf16.mxu0 0
        %1270 = vmatpush1.bf16.msra.mxu0 0
        %1271 = vmatprep.subr.bf16.mxu0 0
        %1272 = vmatpush1.bf16.msra.mxu0 0
        %1273 = vmatprep.subr.bf16.mxu0 0
        %1274 = vmatpush1.bf16.msra.mxu0 0
        %1275 = vmatprep.subr.bf16.mxu0 0
        %1276 = vmatpush1.bf16.msra.mxu0 0
        %1277 = vmatprep.subr.bf16.mxu0 0
        %1278 = vmatpush1.bf16.msra.mxu0 0
        %1279 = vmatprep.subr.bf16.mxu0 0
        %1280 = vmatpush1.bf16.msra.mxu0 0
        %1281 = vmatprep.mubr.bf16.mxu0 0
        %1282 = vmatmul.mubr.bf16.gmra.mrb[0].mxu0 %v1247
        %v1283 = vpop.f32.mrb[0].mxu0
        %v1284 = vadd.f32 0.0, %v1283
        %v1285 = vpop.f32.mrb[0].mxu0
        %v1286 = vpop.f32.mrb[0].mxu0
        %v1287 = vadd.f32 0.0, %v1286
        %v1288 = vpop.f32.mrb[0].mxu0
        %1289 = vdwg.mxu0
        %v1292 = vunpack.c.l.b16 %v678
        %v1293 = vunpack.c.l.b16 %v679
        %v1294 = vpack.c.b16 %v1293, %v1292
        %v1297 = vsel %vm792, %v1014, 0
        %1299 = vmatprep.subr.bf16.mxu0 0
        %1300 = vmatpush1.bf16.msra.mxu0 %v1294
        %1301 = vmatprep.subr.bf16.mxu0 0
        %1302 = vmatpush1.bf16.msra.mxu0 0
        %1303 = vmatprep.subr.bf16.mxu0 0
        %1304 = vmatpush1.bf16.msra.mxu0 0
        %1305 = vmatprep.subr.bf16.mxu0 0
        %1306 = vmatpush1.bf16.msra.mxu0 0
        %1307 = vmatprep.subr.bf16.mxu0 0
        %1308 = vmatpush1.bf16.msra.mxu0 0
        %1309 = vmatprep.subr.bf16.mxu0 0
        %1310 = vmatpush1.bf16.msra.mxu0 0
        %1311 = vmatprep.subr.bf16.mxu0 0
        %1312 = vmatpush1.bf16.msra.mxu0 0
        %1313 = vmatprep.subr.bf16.mxu0 0
        %1314 = vmatpush1.bf16.msra.mxu0 0
        %1315 = vmatprep.subr.bf16.mxu0 0
        %1316 = vmatpush1.bf16.msra.mxu0 0
        %1317 = vmatprep.subr.bf16.mxu0 0
        %1318 = vmatpush1.bf16.msra.mxu0 0
        %1319 = vmatprep.subr.bf16.mxu0 0
        %1320 = vmatpush1.bf16.msra.mxu0 0
        %1321 = vmatprep.subr.bf16.mxu0 0
        %1322 = vmatpush1.bf16.msra.mxu0 0
        %1323 = vmatprep.subr.bf16.mxu0 0
        %1324 = vmatpush1.bf16.msra.mxu0 0
        %1325 = vmatprep.subr.bf16.mxu0 0
        %1326 = vmatpush1.bf16.msra.mxu0 0
        %1327 = vmatprep.subr.bf16.mxu0 0
        %1328 = vmatpush1.bf16.msra.mxu0 0
        %1329 = vmatprep.subr.bf16.mxu0 0
        %1330 = vmatpush1.bf16.msra.mxu0 0
        %1331 = vmatprep.mubr.bf16.mxu0 0
        %1332 = vmatmul.mubr.bf16.gmra.mrb[0].mxu0 %v1297
        %v1333 = vpop.f32.mrb[0].mxu0
        %v1334 = vadd.f32 %v1284, %v1333
        %v1335 = vpop.f32.mrb[0].mxu0
        %v1336 = vpop.f32.mrb[0].mxu0
        %v1337 = vadd.f32 %v1287, %v1336
        %v1338 = vpop.f32.mrb[0].mxu0
        %1339 = vdwg.mxu0
        %v1341 = vlaneseq
        %v1342 = vshrl.u32 %v1341, 7
        %v1343 = vsub.s32 0, %v1342
        %v1344 = vrot.slane %v682, %v1343
        %v1346 = vadd.f32 %v1334, %v1344
        %v1347 = vadd.f32 %v1337, %v1344
        %v1348 = vadd.f32 %v671, %v1346
        %v1349 = vadd.f32 %v672, %v1347
        %v1350 = vsel %vm720, %v1348, 0.0
        %1351 = vadd.xlane.f32.xlu0 %v1350
        %v1352 = vpop.xlane.xlu0 %1351
        %v1353 = vsel %vm720, %v1349, 0.0
        %1354 = vadd.xlane.f32.xlu0 %v1353
        %v1355 = vpop.xlane.xlu0 %1354
        %v1356 = vrcp.pop 32.0
        %v1357 = vmul.f32 %v1352, %v1356
        %v1358 = vmul.f32 %v1355, %v1356
        %v1359 = vsub.f32 %v1348, %v1357
        %v1360 = vsub.f32 %v1349, %v1358
        %v1361 = vmul.f32 %v1359, %v1359
        %v1362 = vmul.f32 %v1360, %v1360
        %v1363 = vsel %vm720, %v1361, 0.0
        %1364 = vadd.xlane.f32.xlu0 %v1363
        %v1365 = vpop.xlane.xlu0 %1364
        %v1366 = vsel %vm720, %v1362, 0.0
        %1367 = vadd.xlane.f32.xlu0 %v1366
        %v1368 = vpop.xlane.xlu0 %1367
        %v1369 = vmul.f32 %v1365, %v1356
        %v1370 = vmul.f32 %v1368, %v1356
        %v1371 = vadd.f32 %v1369, 1e-05
        %v1372 = vadd.f32 %v1370, 1e-05
        %v1373 = vrsqrt.pop %v1371
        %v1374 = vrsqrt.pop %v1372
        %v1375 = vmul.f32 %v1359, %v1373
        %v1376 = vmul.f32 %v1360, %v1374
        %v1378 = vlaneseq
        %v1379 = vshrl.u32 %v1378, 7
        %v1380 = vsub.s32 0, %v1379
        %v1381 = vrot.slane %v683, %v1380
        %v1383 = vmul.f32 %v1375, %v1381
        %v1384 = vmul.f32 %v1376, %v1381
        %v1386 = vlaneseq
        %v1387 = vshrl.u32 %v1386, 7
        %v1388 = vsub.s32 0, %v1387
        %v1389 = vrot.slane %v684, %v1388
        %v1391 = vadd.f32 %v1383, %v1389
        %v1392 = vadd.f32 %v1384, %v1389
        %v1393 = vpack.c.bf16 %v1392, %v1391
        %v1395 = vlaneseq
        %v1396 = vshrl.u32 %v1395, 7
        %v1397 = vsub.s32 0, %v1396
        %v1398 = vrot.slane %v689, %v1397
        %v1404 = vunpack.c.l.b16 %v685
        %v1405 = vunpack.c.l.b16 %v686
        %v1406 = vunpack.c.l.b16 %v687
        %v1407 = vunpack.c.l.b16 %v688
        %v1408 = vpack.c.b16 %v1405, %v1404
        %v1409 = vpack.c.b16 %v1407, %v1406
        %v1413 = vsel %vm720, %v1393, 0
        %1415 = vmatprep.subr.bf16.mxu0 0
        %1416 = vmatpush1.bf16.msra.mxu0 %v1408
        %1417 = vmatprep.subr.bf16.mxu0 0
        %1418 = vmatpush1.bf16.msra.mxu0 %v1409
        %1419 = vmatprep.subr.bf16.mxu0 0
        %1420 = vmatpush1.bf16.msra.mxu0 0
        %1421 = vmatprep.subr.bf16.mxu0 0
        %1422 = vmatpush1.bf16.msra.mxu0 0
        %1423 = vmatprep.subr.bf16.mxu0 0
        %1424 = vmatpush1.bf16.msra.mxu0 0
        %1425 = vmatprep.subr.bf16.mxu0 0
        %1426 = vmatpush1.bf16.msra.mxu0 0
        %1427 = vmatprep.subr.bf16.mxu0 0
        %1428 = vmatpush1.bf16.msra.mxu0 0
        %1429 = vmatprep.subr.bf16.mxu0 0
        %1430 = vmatpush1.bf16.msra.mxu0 0
        %1431 = vmatprep.subr.bf16.mxu0 0
        %1432 = vmatpush1.bf16.msra.mxu0 0
        %1433 = vmatprep.subr.bf16.mxu0 0
        %1434 = vmatpush1.bf16.msra.mxu0 0
        %1435 = vmatprep.subr.bf16.mxu0 0
        %1436 = vmatpush1.bf16.msra.mxu0 0
        %1437 = vmatprep.subr.bf16.mxu0 0
        %1438 = vmatpush1.bf16.msra.mxu0 0
        %1439 = vmatprep.subr.bf16.mxu0 0
        %1440 = vmatpush1.bf16.msra.mxu0 0
        %1441 = vmatprep.subr.bf16.mxu0 0
        %1442 = vmatpush1.bf16.msra.mxu0 0
        %1443 = vmatprep.subr.bf16.mxu0 0
        %1444 = vmatpush1.bf16.msra.mxu0 0
        %1445 = vmatprep.subr.bf16.mxu0 0
        %1446 = vmatpush1.bf16.msra.mxu0 0
        %1447 = vmatprep.mubr.bf16.mxu0 0
        %1448 = vmatmul.mubr.bf16.gmra.mrb[0].mxu0 %v1413
        %v1449 = vpop.f32.mrb[0].mxu0
        %v1450 = vadd.f32 %v1398, %v1449
        %v1451 = vpop.f32.mrb[0].mxu0
        %v1452 = vpop.f32.mrb[0].mxu0
        %v1453 = vadd.f32 %v1398, %v1452
        %v1454 = vpop.f32.mrb[0].mxu0
        %1455 = vdwg.mxu0
        %v1456 = vmax.f32 %v1450, 0.0
        %v1457 = vmax.f32 %v1453, 0.0
        %v1458 = vpack.c.bf16 %v1457, %v1456
        %v1460 = vlaneseq
        %v1461 = vshrl.u32 %v1460, 7
        %v1462 = vsub.s32 0, %v1461
        %v1463 = vrot.slane %v698, %v1462
        %v1473 = vunpack.c.l.b16 %v690
        %v1474 = vunpack.c.l.b16 %v691
        %v1475 = vunpack.c.l.b16 %v692
        %v1476 = vunpack.c.l.b16 %v693
        %v1477 = vunpack.c.l.b16 %v694
        %v1478 = vunpack.c.l.b16 %v695
        %v1479 = vunpack.c.l.b16 %v696
        %v1480 = vunpack.c.l.b16 %v697
        %v1481 = vpack.c.b16 %v1474, %v1473
        %v1482 = vpack.c.b16 %v1476, %v1475
        %v1483 = vpack.c.b16 %v1478, %v1477
        %v1484 = vpack.c.b16 %v1480, %v1479
        %vm1489 = vcmask 523264
        %v1491 = vsel %vm1489, %v1458, 0
        %1493 = vmatprep.subr.bf16.mxu0 0
        %1494 = vmatpush1.bf16.msra.mxu0 %v1481
        %1495 = vmatprep.subr.bf16.mxu0 0
        %1496 = vmatpush1.bf16.msra.mxu0 %v1482
        %1497 = vmatprep.subr.bf16.mxu0 0
        %1498 = vmatpush1.bf16.msra.mxu0 %v1483
        %1499 = vmatprep.subr.bf16.mxu0 0
        %1500 = vmatpush1.bf16.msra.mxu0 %v1484
        %1501 = vmatprep.subr.bf16.mxu0 0
        %1502 = vmatpush1.bf16.msra.mxu0 0
        %1503 = vmatprep.subr.bf16.mxu0 0
        %1504 = vmatpush1.bf16.msra.mxu0 0
        %1505 = vmatprep.subr.bf16.mxu0 0
        %1506 = vmatpush1.bf16.msra.mxu0 0
        %1507 = vmatprep.subr.bf16.mxu0 0
        %1508 = vmatpush1.bf16.msra.mxu0 0
        %1509 = vmatprep.subr.bf16.mxu0 0
        %1510 = vmatpush1.bf16.msra.mxu0 0
        %1511 = vmatprep.subr.bf16.mxu0 0
        %1512 = vmatpush1.bf16.msra.mxu0 0
        %1513 = vmatprep.subr.bf16.mxu0 0
        %1514 = vmatpush1.bf16.msra.mxu0 0
        %1515 = vmatprep.subr.bf16.mxu0 0
        %1516 = vmatpush1.bf16.msra.mxu0 0
        %1517 = vmatprep.subr.bf16.mxu0 0
        %1518 = vmatpush1.bf16.msra.mxu0 0
        %1519 = vmatprep.subr.bf16.mxu0 0
        %1520 = vmatpush1.bf16.msra.mxu0 0
        %1521 = vmatprep.subr.bf16.mxu0 0
        %1522 = vmatpush1.bf16.msra.mxu0 0
        %1523 = vmatprep.subr.bf16.mxu0 0
        %1524 = vmatpush1.bf16.msra.mxu0 0
        %1525 = vmatprep.mubr.bf16.mxu0 0
        %1526 = vmatmul.mubr.bf16.gmra.mrb[0].mxu0 %v1491
        %v1527 = vpop.f32.mrb[0].mxu0
        %v1528 = vadd.f32 %v1463, %v1527
        %v1529 = vpop.f32.mrb[0].mxu0
        %v1530 = vpop.f32.mrb[0].mxu0
        %v1531 = vadd.f32 %v1463, %v1530
        %v1532 = vpop.f32.mrb[0].mxu0
        %1533 = vdwg.mxu0
        %v1534 = vadd.f32 %v1391, %v1528
        %v1535 = vadd.f32 %v1392, %v1531
        %v1536 = vsel %vm720, %v1534, 0.0
        %1537 = vadd.xlane.f32.xlu0 %v1536
        %v1538 = vpop.xlane.xlu0 %1537
        %v1539 = vsel %vm720, %v1535, 0.0
        %1540 = vadd.xlane.f32.xlu0 %v1539
        %v1541 = vpop.xlane.xlu0 %1540
        %v1542 = vmul.f32 %v1538, %v1356
        %v1543 = vmul.f32 %v1541, %v1356
        %v1544 = vsub.f32 %v1534, %v1542
        %v1545 = vsub.f32 %v1535, %v1543
        %v1546 = vmul.f32 %v1544, %v1544
        %v1547 = vmul.f32 %v1545, %v1545
        %v1548 = vsel %vm720, %v1546, 0.0
        %1549 = vadd.xlane.f32.xlu0 %v1548
        %v1550 = vpop.xlane.xlu0 %1549
        %v1551 = vsel %vm720, %v1547, 0.0
        %1552 = vadd.xlane.f32.xlu0 %v1551
        %v1553 = vpop.xlane.xlu0 %1552
        %v1554 = vmul.f32 %v1550, %v1356
        %v1555 = vmul.f32 %v1553, %v1356
        %v1556 = vadd.f32 %v1554, 1e-05
        %v1557 = vadd.f32 %v1555, 1e-05
        %v1558 = vrsqrt.pop %v1556
        %v1559 = vrsqrt.pop %v1557
        %v1560 = vmul.f32 %v1544, %v1558
        %v1561 = vmul.f32 %v1545, %v1559
        %v1563 = vlaneseq
        %v1564 = vshrl.u32 %v1563, 7
        %v1565 = vsub.s32 0, %v1564
        %v1566 = vrot.slane %v699, %v1565
        %v1568 = vmul.f32 %v1560, %v1566
        %v1569 = vmul.f32 %v1561, %v1566
        %v1571 = vlaneseq
        %v1572 = vshrl.u32 %v1571, 7
        %v1573 = vsub.s32 0, %v1572
        %v1574 = vrot.slane %v700, %v1573
        %v1576 = vadd.f32 %v1568, %v1574
        %v1577 = vadd.f32 %v1569, %v1574
        %1578 = vst.msk [vmem:[#allocation2] sm:$0xff] %vm720, %v1576
        %1579 = vst.msk [vmem:[#allocation2 + $0x8] sm:$0xff] %vm720, %v1577
        %p1580 = scmp.eq.s32.totalorder %s30, 1
        // Predicated region
        $region89: #{tpu_custom_call.1} parent=75 // pred_check
          %p1581 = pneg %p1580
        $region90: #{tpu_custom_call.1} parent=75 // pred_check_branch
          %1583 = sbr.rel (%p1581) target = $region92
        $region91: #{tpu_custom_call.1} parent=75 // pred_region
          %1584 = vst.msk [vmem:[#allocation8] sm:$0xff] %vm720, %v1576
          %1585 = vst.msk [vmem:[#allocation8 + $0x8] sm:$0xff] %vm720, %v1577
        $region92: #{tpu_custom_call.1} parent=75 // pred_fallthru
          _
        // Predicated region
        $region93: #{tpu_custom_call.1} parent=75 // pred_check
          %p1586 = pneg %p397
        $region94: #{tpu_custom_call.1} parent=75 // pred_check_branch
          %1588 = sbr.rel (%p1586) target = $region96
        $region95: #{tpu_custom_call.1} parent=75 // pred_region
          %s1590 = ssub.s32 256, 256
          %1591 = vsyncadd [#allocation5], %s1590
          %s1592 = sshll.u32 [#allocation8], 4
          %s1593 = int_to_ptr.vmem [resolvable:$true] %s1592
          %1598 = dma.vmem_to_hbm [thread:$0]  %s1593, 256, %s14, [#allocation5], 128, 128, 8
        $region96: #{tpu_custom_call.1} parent=75 // pred_fallthru
          _
        // Predicated region
        $region97: #{tpu_custom_call.1} parent=75 // pred_check
          %p1599 = pneg %p397
        $region98: #{tpu_custom_call.1} parent=75 // pred_check_branch
          %1601 = sbr.rel (%p1599) target = $region100
        $region99: #{tpu_custom_call.1} parent=75 // pred_region
          %1602 = dma.done [#allocation5], 256
        $region100: #{tpu_custom_call.1} parent=75 // pred_fallthru
          _
      $region76: #{tpu_custom_call.1} parent=5 // pred_fallthru
        _
      %p1603 = scmp.le.s32.totalorder 2, %s25
      // Predicated region
      $region101: #{tpu_custom_call.1} parent=5 // pred_check
        %p1604 = pneg %p1603
      $region102: #{tpu_custom_call.1} parent=5 // pred_check_branch
        %1606 = sbr.rel (%p1604) target = $region104
      $region103: #{tpu_custom_call.1} parent=5 // pred_region
        %s1607 = ssub.s32 %s25, 2
      $region104: #{tpu_custom_call.1} parent=5 // pred_fallthru
        _
    $region6: #{tpu_custom_call.1} parent=1 // loop_footer
      %s29 = sadd.s32 1, %s25
    $region7: #{tpu_custom_call.1} parent=1 // loop_footer_branch
      %24 = sbr.rel target = $region3
    $region8: #{tpu_custom_call.1} parent=1 // loop_exit
      _
    %1608 = vsyncpa [#allocation4], 1
    %s1609 = scalar_lea.sflag [#allocation4], 1
    %1610 = vsyncpa %s1609, 1
    %1611 = vsyncpa [#allocation7], 1
    %s1612 = scalar_lea.sflag [#allocation7], 1
    %1613 = vsyncpa %s1612, 1
    %1614 = vsyncpa [#allocation5], 1
    %s1615 = scalar_lea.sflag [#allocation5], 1
    %1616 = vsyncpa %s1615, 1

</llo_original>
